<compile_context>
chip_gen: v5e
topology: v5e:2x2
jax: 0.10.0
libtpu: 0.0.40
codegen_flags: <defaults>
</compile_context>

<pallas_src>
import jax
import jax.numpy as jnp
from jax.experimental import pallas as pl
from jax.experimental.pallas import tpu as pltpu

BN_EPS = 1e-5
TM = 512                      # rows per M tile (lives in VMEM; ~85% of HBM roofline)
LANE = 128                    # matmul output channels padded to the lane width
VMEM_LIMIT = 48 * 1024 * 1024 # deliberate budget; leaves headroom on v7x (64 MiB)


def _round_up(x, m):
    return (x + m - 1) // m * m


# ---------------------------------------------------------------------------
# Pass 1: tiled matmul (bf16 out) + per-channel sum / sum-of-squares.
# ---------------------------------------------------------------------------
def _matmul_stats_kernel(p_ref, w_ref, y_ref, sum_ref, sq_ref):
    # p_ref: (TM, K) bf16    w_ref: (K, Cp) bf16    y_ref: (TM, Cp) bf16
    # sum_ref / sq_ref: (8, Cp) f32 resident accumulators (one block per split).
    @pl.when(pl.program_id(1) == 0)
    def _():
        sum_ref[...] = jnp.zeros_like(sum_ref)
        sq_ref[...] = jnp.zeros_like(sq_ref)

    y = jnp.dot(p_ref[...], w_ref[...], preferred_element_type=jnp.float32)
    y_ref[...] = y.astype(y_ref.dtype)          # bf16 HBM writeback

    tm, cp = y.shape
    y3 = y.reshape(tm // 8, 8, cp)              # sublane-compatible, no relayout
    sum_ref[...] += jnp.sum(y3, axis=0)         # pure VPU adds (hidden under MXU)
    sq_ref[...] += jnp.sum(y3 * y3, axis=0)


def _matmul_stats(patches, w_mat, cp, tm, n_split):
    m_pad, k = patches.shape
    tiles = m_pad // tm
    inner = tiles // n_split
    return pl.pallas_call(
        _matmul_stats_kernel,
        out_shape=(
            jax.ShapeDtypeStruct((m_pad, cp), jnp.bfloat16),     # pre-BN activations
            jax.ShapeDtypeStruct((8 * n_split, cp), jnp.float32),  # sum(y) partials
            jax.ShapeDtypeStruct((8 * n_split, cp), jnp.float32),  # sum(y*y) partials
        ),
        grid=(n_split, inner),
        in_specs=[
            pl.BlockSpec((tm, k), lambda s, i: (s * inner + i, 0)),
            pl.BlockSpec((k, cp), lambda s, i: (0, 0)),          # weights stay resident
        ],
        out_specs=(
            pl.BlockSpec((tm, cp), lambda s, i: (s * inner + i, 0)),
            pl.BlockSpec((8, cp), lambda s, i: (s, 0)),
            pl.BlockSpec((8, cp), lambda s, i: (s, 0)),
        ),
        compiler_params=pltpu.CompilerParams(
            dimension_semantics=("parallel", "arbitrary"),       # v7x: 2 TCs on axis 0
            vmem_limit_bytes=VMEM_LIMIT),
    )(patches, w_mat)


# ---------------------------------------------------------------------------
# Pass 2: folded BN scale/shift fused with ReLU or with the residual add.
# Output (and residual input) carry the true channel count -> no padded copies.
# ---------------------------------------------------------------------------
def _bn_relu_kernel(y_ref, scale_ref, shift_ref, o_ref):
    c = o_ref.shape[-1]
    act = y_ref[:, :c].astype(jnp.float32) * scale_ref[:, :c] + shift_ref[:, :c]
    o_ref[...] = jnp.maximum(act, 0.0).astype(o_ref.dtype)


def _bn_residual_kernel(y_ref, scale_ref, shift_ref, res_ref, o_ref):
    c = o_ref.shape[-1]
    act = y_ref[:, :c].astype(jnp.float32) * scale_ref[:, :c] + shift_ref[:, :c]
    o_ref[...] = (act + res_ref[...].astype(jnp.float32)).astype(o_ref.dtype)


def _bn_apply(y, scale, shift, residual, c_out, out_dtype, *, tm):
    m_pad, cp = y.shape
    y_spec = pl.BlockSpec((tm, cp), lambda i: (i, 0))
    vec_spec = pl.BlockSpec((1, cp), lambda i: (0, 0))
    narrow_spec = pl.BlockSpec((tm, c_out), lambda i: (i, 0))   # full last dim -> legal
    if residual is None:
        kernel = _bn_relu_kernel
        in_specs = [y_spec, vec_spec, vec_spec]
        args = (y, scale, shift)
    else:
        kernel = _bn_residual_kernel
        in_specs = [y_spec, vec_spec, vec_spec, narrow_spec]
        args = (y, scale, shift, residual)
    return pl.pallas_call(
        kernel,
        out_shape=jax.ShapeDtypeStruct((m_pad, c_out), out_dtype),
        grid=(m_pad // tm,),
        in_specs=in_specs,
        out_specs=narrow_spec,
        compiler_params=pltpu.CompilerParams(dimension_semantics=("parallel",)),
    )(*args)


# ---------------------------------------------------------------------------
# im2col with reflect padding, NHWC in -> (N*Ho*Wo, kh*kw*Cin), K order (i, j, ci).
# ---------------------------------------------------------------------------
def _im2col_reflect_nhwc(x_nhwc, kh, kw, stride, pad):
    xp = jnp.pad(x_nhwc, ((0, 0), (pad, pad), (pad, pad), (0, 0)), mode="reflect")
    n, hp, wp, c = xp.shape
    ho = (hp - kh) // stride + 1
    wo = (wp - kw) // stride + 1
    cols = [xp[:, i:i + ho * stride:stride, j:j + wo * stride:stride, :]
            for i in range(kh) for j in range(kw)]
    patches = jnp.concatenate(cols, axis=-1).reshape(n * ho * wo, kh * kw * c)
    return patches, ho, wo


# ---------------------------------------------------------------------------
# One _ConvBlock: conv -> training-mode BN -> [ReLU | + residual].  NHWC in/out.
# ---------------------------------------------------------------------------
def _conv_bn_block(x_nhwc, weight, gamma, beta, *, residual=None, tm=TM):
    n, h, w, c = x_nhwc.shape
    cout, cin, kh, kw = weight.shape
    cp = _round_up(cout, LANE)

    patches, ho, wo = _im2col_reflect_nhwc(x_nhwc, kh, kw, 1, 1)
    m, k = patches.shape
    m_pad = _round_up(m, tm)
    tiles = m_pad // tm
    n_split = 2 if (tiles >= 2 and tiles % 2 == 0) else 1   # v7x: one split per TC

    # bf16 MXU operands; zero row/lane padding keeps BN stats exact when the
    # sums are divided by the true m.
    patches = jnp.pad(patches, ((0, m_pad - m), (0, 0))).astype(jnp.bfloat16)
    # (Cout, Cin, kh, kw) -> (kh*kw*Cin, Cout) to match the (i, j, ci) patch order.
    w_mat = jnp.transpose(weight, (2, 3, 1, 0)).reshape(kh * kw * cin, cout)
    w_mat = jnp.pad(w_mat.astype(jnp.float32),
                    ((0, 0), (0, cp - cout))).astype(jnp.bfloat16)

    y, ssum, ssq = _matmul_stats(patches, w_mat, cp, tm, n_split)

    # Fold BN into one per-channel scale/shift (all f32).
    ssum = jnp.sum(ssum, axis=0)
    ssq = jnp.sum(ssq, axis=0)
    mean = ssum / m
    var = jnp.maximum(ssq / m - mean * mean, 0.0)            # biased var (PyTorch BN fwd)
    inv = jax.lax.rsqrt(var + BN_EPS)
    g = jnp.pad(gamma.astype(jnp.float32), (0, cp - cout), constant_values=1.0)
    b = jnp.pad(beta.astype(jnp.float32), (0, cp - cout))
    scale = (g * inv).reshape(1, cp)
    shift = (b - mean * g * inv).reshape(1, cp)

    if residual is None:
        out = _bn_apply(y, scale, shift, None, cout, jnp.bfloat16, tm=tm)   # bf16 h1
    else:
        res_flat = jnp.pad(residual.reshape(m, cout), ((0, m_pad - m), (0, 0)))
        out = _bn_apply(y, scale, shift, res_flat, cout, jnp.float32, tm=tm)
    return out[:m].reshape(n, ho, wo, cout)


# ---------------------------------------------------------------------------
# _ResidualBlock forward.  x: (N, C, H, W) float32 -> (N, C, H, W) float32.
# ---------------------------------------------------------------------------
def residual_block_forward(x_nchw, params, *, tm=TM):
    x_nhwc = jnp.transpose(x_nchw.astype(jnp.float32), (0, 2, 3, 1))   # one relayout in
    # Block 1: conv -> BN -> ReLU (bf16 intermediate feeding block 2's matmul)
    h1 = _conv_bn_block(x_nhwc, params["w1"], params["gamma1"], params["beta1"],
                        residual=None, tm=tm)
    # Block 2: conv -> BN, residual add fused into pass 2 (f32).
    out = _conv_bn_block(h1, params["w2"], params["gamma2"], params["beta2"],
                         residual=x_nhwc, tm=tm)
    return jnp.transpose(out, (0, 3, 1, 2))                            # one relayout out


if __name__ == "__main__":
    # Small deterministic example: batch=2, channels=4, spatial 16x16, 3x3 convs.
    N, C, H, W, KH, KW = 2, 4, 16, 16, 3, 3

    key = jax.random.PRNGKey(0)
    k1, k2, kx = jax.random.split(key, 3)

    x = jax.random.normal(kx, (N, C, H, W), dtype=jnp.float32)
    fan_in = C * KH * KW
    params = {
        "w1": jax.random.normal(k1, (C, C, KH, KW), dtype=jnp.float32)
              / jnp.sqrt(fan_in),
        "gamma1": jnp.ones((C,), jnp.float32),    # BatchNorm2d weight init
        "beta1": jnp.zeros((C,), jnp.float32),    # BatchNorm2d bias init
        "w2": jax.random.normal(k2, (C, C, KH, KW), dtype=jnp.float32)
              / jnp.sqrt(fan_in),
        "gamma2": jnp.ones((C,), jnp.float32),
        "beta2": jnp.zeros((C,), jnp.float32),
    }

    out = jax.jit(residual_block_forward)(x, params)
    jax.block_until_ready(out)
    assert out.shape == (N, C, H, W), out.shape
    print("KERNEL_OK")
</pallas_src>

<mosaic_0001>
module attributes {stable_mosaic.version = 11 : i64} {
  func.func @_matmul_stats_kernel(%arg0: i32, %arg1: i32, %arg2: memref<512x36xbf16, #tpu.memory_space<vmem>>, %arg3: memref<36x128xbf16, #tpu.memory_space<vmem>>, %arg4: memref<512x128xbf16, #tpu.memory_space<vmem>>, %arg5: memref<8x128xf32, #tpu.memory_space<vmem>>, %arg6: memref<8x128xf32, #tpu.memory_space<vmem>>) attributes {dimension_semantics = [#tpu.dimension_semantics<parallel>, #tpu.dimension_semantics<arbitrary>], iteration_bounds = array<i64: 1, 1>, scalar_prefetch = 0 : i64, scratch_operands = 0 : i64, tpu.core_type = #tpu.core_type<tc>, window_params = [{transform_indices = @transform_0, window_bounds = array<i64: 512, 36>}, {pipeline_mode = #tpu.pipeline_mode<synchronous>, transform_indices = @transform_1, window_bounds = array<i64: 36, 128>}, {transform_indices = @transform_2, window_bounds = array<i64: 512, 128>}, {transform_indices = @transform_3, window_bounds = array<i64: 8, 128>}, {transform_indices = @transform_4, window_bounds = array<i64: 8, 128>}]} {
    %c0_i32 = arith.constant 0 : i32
    %0 = arith.cmpi eq, %arg1, %c0_i32 : i32
    %1 = arith.extui %0 : i1 to i32
    %c0_i32_0 = arith.constant 0 : i32
    %2 = arith.cmpi ne, %1, %c0_i32_0 : i32
    scf.if %2 {
      %cst_16 = arith.constant 0.000000e+00 : f32
      %18 = vector.broadcast %cst_16 : f32 to vector<8x128xf32>
      %c0_17 = arith.constant 0 : index
      %c0_18 = arith.constant 0 : index
      %19 = vector.load %arg5[%c0_17, %c0_18] : memref<8x128xf32, #tpu.memory_space<vmem>>, vector<8x128xf32>
      tpu.vector_store %arg5[%c0_17, %c0_18], %18 {strides = array<i32>} : memref<8x128xf32, #tpu.memory_space<vmem>>, vector<8x128xf32>,
      %cst_19 = arith.constant 0.000000e+00 : f32
      %20 = vector.broadcast %cst_19 : f32 to vector<8x128xf32>
      %c0_20 = arith.constant 0 : index
      %c0_21 = arith.constant 0 : index
      %21 = vector.load %arg6[%c0_20, %c0_21] : memref<8x128xf32, #tpu.memory_space<vmem>>, vector<8x128xf32>
      tpu.vector_store %arg6[%c0_20, %c0_21], %20 {strides = array<i32>} : memref<8x128xf32, #tpu.memory_space<vmem>>, vector<8x128xf32>,
    } else {
    }
    %c0 = arith.constant 0 : index
    %c0_1 = arith.constant 0 : index
    %3 = vector.load %arg2[%c0, %c0_1] : memref<512x36xbf16, #tpu.memory_space<vmem>>, vector<512x36xbf16>
    %c0_2 = arith.constant 0 : index
    %c0_3 = arith.constant 0 : index
    %4 = vector.load %arg3[%c0_2, %c0_3] : memref<36x128xbf16, #tpu.memory_space<vmem>>, vector<36x128xbf16>
    %cst = arith.constant dense<0.000000e+00> : vector<512x128xf32>
    %5 = tpu.matmul %3, %4, %cst {dimension_numbers = #tpu.dot_dimension_numbers<[1], [0], [0], [1], [0, 0, 1, 1], [], []>} : vector<512x36xbf16>, vector<36x128xbf16>, vector<512x128xf32> -> vector<512x128xf32>
    %6 = arith.truncf %5 : vector<512x128xf32> to vector<512x128xbf16>
    %c0_4 = arith.constant 0 : index
    %c0_5 = arith.constant 0 : index
    %7 = vector.load %arg4[%c0_4, %c0_5] : memref<512x128xbf16, #tpu.memory_space<vmem>>, vector<512x128xbf16>
    tpu.vector_store %arg4[%c0_4, %c0_5], %6 {strides = array<i32>} : memref<512x128xbf16, #tpu.memory_space<vmem>>, vector<512x128xbf16>,
    %8 = vector.shape_cast %5 : vector<512x128xf32> to vector<64x8x128xf32>
    %c0_6 = arith.constant 0 : index
    %c0_7 = arith.constant 0 : index
    %9 = vector.load %arg5[%c0_6, %c0_7] : memref<8x128xf32, #tpu.memory_space<vmem>>, vector<8x128xf32>
    %cst_8 = arith.constant dense<0.000000e+00> : vector<8x128xf32>
    %10 = vector.multi_reduction <add>, %8, %cst_8 [0] : vector<64x8x128xf32> to vector<8x128xf32>
    %11 = arith.addf %9, %10 : vector<8x128xf32>
    %c0_9 = arith.constant 0 : index
    %c0_10 = arith.constant 0 : index
    %12 = vector.load %arg5[%c0_9, %c0_10] : memref<8x128xf32, #tpu.memory_space<vmem>>, vector<8x128xf32>
    tpu.vector_store %arg5[%c0_9, %c0_10], %11 {strides = array<i32>} : memref<8x128xf32, #tpu.memory_space<vmem>>, vector<8x128xf32>,
    %c0_11 = arith.constant 0 : index
    %c0_12 = arith.constant 0 : index
    %13 = vector.load %arg6[%c0_11, %c0_12] : memref<8x128xf32, #tpu.memory_space<vmem>>, vector<8x128xf32>
    %14 = arith.mulf %8, %8 : vector<64x8x128xf32>
    %cst_13 = arith.constant dense<0.000000e+00> : vector<8x128xf32>
    %15 = vector.multi_reduction <add>, %14, %cst_13 [0] : vector<64x8x128xf32> to vector<8x128xf32>
    %16 = arith.addf %13, %15 : vector<8x128xf32>
    %c0_14 = arith.constant 0 : index
    %c0_15 = arith.constant 0 : index
    %17 = vector.load %arg6[%c0_14, %c0_15] : memref<8x128xf32, #tpu.memory_space<vmem>>, vector<8x128xf32>
    tpu.vector_store %arg6[%c0_14, %c0_15], %16 {strides = array<i32>} : memref<8x128xf32, #tpu.memory_space<vmem>>, vector<8x128xf32>,
    return
  }
  func.func @transform_0(%arg0: i32, %arg1: i32) -> (i32, i32) {
    %c1_i32 = arith.constant 1 : i32
    %0 = arith.muli %arg0, %c1_i32 : i32
    %1 = arith.addi %0, %arg1 : i32
    %c0_i32 = arith.constant 0 : i32
    %c0_i32_0 = arith.constant 0 : i32
    return %1, %c0_i32 : i32, i32
  }
  func.func @transform_1(%arg0: i32, %arg1: i32) -> (i32, i32) {
    %c0_i32 = arith.constant 0 : i32
    %c0_i32_0 = arith.constant 0 : i32
    %c0_i32_1 = arith.constant 0 : i32
    return %c0_i32, %c0_i32_0 : i32, i32
  }
  func.func @transform_2(%arg0: i32, %arg1: i32) -> (i32, i32) {
    %c1_i32 = arith.constant 1 : i32
    %0 = arith.muli %arg0, %c1_i32 : i32
    %1 = arith.addi %0, %arg1 : i32
    %c0_i32 = arith.constant 0 : i32
    %c0_i32_0 = arith.constant 0 : i32
    return %1, %c0_i32 : i32, i32
  }
  func.func @transform_3(%arg0: i32, %arg1: i32) -> (i32, i32) {
    %c0_i32 = arith.constant 0 : i32
    %c0_i32_0 = arith.constant 0 : i32
    return %arg0, %c0_i32 : i32, i32
  }
  func.func @transform_4(%arg0: i32, %arg1: i32) -> (i32, i32) {
    %c0_i32 = arith.constant 0 : i32
    %c0_i32_0 = arith.constant 0 : i32
    return %arg0, %c0_i32 : i32, i32
  }
}

module attributes {stable_mosaic.version = 11 : i64} {
  func.func @_bn_relu_kernel(%arg0: i32, %arg1: memref<512x128xbf16, #tpu.memory_space<vmem>>, %arg2: memref<1x128xf32, #tpu.memory_space<vmem>>, %arg3: memref<1x128xf32, #tpu.memory_space<vmem>>, %arg4: memref<512x4xbf16, #tpu.memory_space<vmem>>) attributes {dimension_semantics = [#tpu.dimension_semantics<parallel>], iteration_bounds = array<i64: 1>, scalar_prefetch = 0 : i64, scratch_operands = 0 : i64, tpu.core_type = #tpu.core_type<tc>, window_params = [{transform_indices = @transform_0, window_bounds = array<i64: 512, 128>}, {pipeline_mode = #tpu.pipeline_mode<synchronous>, transform_indices = @transform_1, window_bounds = array<i64: 1, 128>}, {pipeline_mode = #tpu.pipeline_mode<synchronous>, transform_indices = @transform_2, window_bounds = array<i64: 1, 128>}, {transform_indices = @transform_3, window_bounds = array<i64: 512, 4>}]} {
    %c0 = arith.constant 0 : index
    %c0_0 = arith.constant 0 : index
    %0 = vector.load %arg1[%c0, %c0_0] : memref<512x128xbf16, #tpu.memory_space<vmem>>, vector<512x4xbf16>
    %1 = arith.extf %0 : vector<512x4xbf16> to vector<512x4xf32>
    %c0_1 = arith.constant 0 : index
    %c0_2 = arith.constant 0 : index
    %2 = vector.load %arg2[%c0_1, %c0_2] : memref<1x128xf32, #tpu.memory_space<vmem>>, vector<1x4xf32>
    %3 = vector.broadcast %2 : vector<1x4xf32> to vector<512x4xf32>
    %4 = arith.mulf %1, %3 : vector<512x4xf32>
    %c0_3 = arith.constant 0 : index
    %c0_4 = arith.constant 0 : index
    %5 = vector.load %arg3[%c0_3, %c0_4] : memref<1x128xf32, #tpu.memory_space<vmem>>, vector<1x4xf32>
    %6 = vector.broadcast %5 : vector<1x4xf32> to vector<512x4xf32>
    %7 = arith.addf %4, %6 : vector<512x4xf32>
    %cst = arith.constant 0.000000e+00 : f32
    %8 = vector.broadcast %cst : f32 to vector<512x4xf32>
    %9 = arith.maximumf %7, %8 : vector<512x4xf32>
    %10 = arith.truncf %9 : vector<512x4xf32> to vector<512x4xbf16>
    %c0_5 = arith.constant 0 : index
    %c0_6 = arith.constant 0 : index
    %11 = vector.load %arg4[%c0_5, %c0_6] : memref<512x4xbf16, #tpu.memory_space<vmem>>, vector<512x4xbf16>
    tpu.vector_store %arg4[%c0_5, %c0_6], %10 {strides = array<i32>} : memref<512x4xbf16, #tpu.memory_space<vmem>>, vector<512x4xbf16>,
    return
  }
  func.func @transform_0(%arg0: i32) -> (i32, i32) {
    %c0_i32 = arith.constant 0 : i32
    %c0_i32_0 = arith.constant 0 : i32
    return %arg0, %c0_i32 : i32, i32
  }
  func.func @transform_1(%arg0: i32) -> (i32, i32) {
    %c0_i32 = arith.constant 0 : i32
    %c0_i32_0 = arith.constant 0 : i32
    %c0_i32_1 = arith.constant 0 : i32
    return %c0_i32, %c0_i32_0 : i32, i32
  }
  func.func @transform_2(%arg0: i32) -> (i32, i32) {
    %c0_i32 = arith.constant 0 : i32
    %c0_i32_0 = arith.constant 0 : i32
    %c0_i32_1 = arith.constant 0 : i32
    return %c0_i32, %c0_i32_0 : i32, i32
  }
  func.func @transform_3(%arg0: i32) -> (i32, i32) {
    %c0_i32 = arith.constant 0 : i32
    %c0_i32_0 = arith.constant 0 : i32
    return %arg0, %c0_i32 : i32, i32
  }
}

module attributes {stable_mosaic.version = 11 : i64} {
  func.func @_bn_residual_kernel(%arg0: i32, %arg1: memref<512x128xbf16, #tpu.memory_space<vmem>>, %arg2: memref<1x128xf32, #tpu.memory_space<vmem>>, %arg3: memref<1x128xf32, #tpu.memory_space<vmem>>, %arg4: memref<512x4xf32, #tpu.memory_space<vmem>>, %arg5: memref<512x4xf32, #tpu.memory_space<vmem>>) attributes {dimension_semantics = [#tpu.dimension_semantics<parallel>], iteration_bounds = array<i64: 1>, scalar_prefetch = 0 : i64, scratch_operands = 0 : i64, tpu.core_type = #tpu.core_type<tc>, window_params = [{transform_indices = @transform_0, window_bounds = array<i64: 512, 128>}, {pipeline_mode = #tpu.pipeline_mode<synchronous>, transform_indices = @transform_1, window_bounds = array<i64: 1, 128>}, {pipeline_mode = #tpu.pipeline_mode<synchronous>, transform_indices = @transform_2, window_bounds = array<i64: 1, 128>}, {transform_indices = @transform_3, window_bounds = array<i64: 512, 4>}, {transform_indices = @transform_4, window_bounds = array<i64: 512, 4>}]} {
    %c0 = arith.constant 0 : index
    %c0_0 = arith.constant 0 : index
    %0 = vector.load %arg1[%c0, %c0_0] : memref<512x128xbf16, #tpu.memory_space<vmem>>, vector<512x4xbf16>
    %1 = arith.extf %0 : vector<512x4xbf16> to vector<512x4xf32>
    %c0_1 = arith.constant 0 : index
    %c0_2 = arith.constant 0 : index
    %2 = vector.load %arg2[%c0_1, %c0_2] : memref<1x128xf32, #tpu.memory_space<vmem>>, vector<1x4xf32>
    %3 = vector.broadcast %2 : vector<1x4xf32> to vector<512x4xf32>
    %4 = arith.mulf %1, %3 : vector<512x4xf32>
    %c0_3 = arith.constant 0 : index
    %c0_4 = arith.constant 0 : index
    %5 = vector.load %arg3[%c0_3, %c0_4] : memref<1x128xf32, #tpu.memory_space<vmem>>, vector<1x4xf32>
    %6 = vector.broadcast %5 : vector<1x4xf32> to vector<512x4xf32>
    %7 = arith.addf %4, %6 : vector<512x4xf32>
    %c0_5 = arith.constant 0 : index
    %c0_6 = arith.constant 0 : index
    %8 = vector.load %arg4[%c0_5, %c0_6] : memref<512x4xf32, #tpu.memory_space<vmem>>, vector<512x4xf32>
    %9 = arith.addf %7, %8 : vector<512x4xf32>
    %c0_7 = arith.constant 0 : index
    %c0_8 = arith.constant 0 : index
    %10 = vector.load %arg5[%c0_7, %c0_8] : memref<512x4xf32, #tpu.memory_space<vmem>>, vector<512x4xf32>
    tpu.vector_store %arg5[%c0_7, %c0_8], %9 {strides = array<i32>} : memref<512x4xf32, #tpu.memory_space<vmem>>, vector<512x4xf32>,
    return
  }
  func.func @transform_0(%arg0: i32) -> (i32, i32) {
    %c0_i32 = arith.constant 0 : i32
    %c0_i32_0 = arith.constant 0 : i32
    return %arg0, %c0_i32 : i32, i32
  }
  func.func @transform_1(%arg0: i32) -> (i32, i32) {
    %c0_i32 = arith.constant 0 : i32
    %c0_i32_0 = arith.constant 0 : i32
    %c0_i32_1 = arith.constant 0 : i32
    return %c0_i32, %c0_i32_0 : i32, i32
  }
  func.func @transform_2(%arg0: i32) -> (i32, i32) {
    %c0_i32 = arith.constant 0 : i32
    %c0_i32_0 = arith.constant 0 : i32
    %c0_i32_1 = arith.constant 0 : i32
    return %c0_i32, %c0_i32_0 : i32, i32
  }
  func.func @transform_3(%arg0: i32) -> (i32, i32) {
    %c0_i32 = arith.constant 0 : i32
    %c0_i32_0 = arith.constant 0 : i32
    return %arg0, %c0_i32 : i32, i32
  }
  func.func @transform_4(%arg0: i32) -> (i32, i32) {
    %c0_i32 = arith.constant 0 : i32
    %c0_i32_0 = arith.constant 0 : i32
    return %arg0, %c0_i32 : i32, i32
  }
}

</mosaic_0001>

<llo_original>
// kernel: residual_block_forward.4
$region0: #{residual_block_forward.4}
  #allocation0 [shape = 'u32[]', space=smem, size = 0x4, offset = 0x4, fixed_abs, tag = 'smem constant byte address 0x4 - core index']
  #allocation1 [shape = 'u32[72,128]{1,0:T(1,128)}', space=vmem, size = 0x9000, scoped, tag = 'internal scratch']
  %s0 = inlined_call_operand.vmem [shape: bf16[512,36], index: 0, kind: input, shape index: {}]
  %s1 = inlined_call_operand.vmem [shape: bf16[36,128], index: 1, kind: input, shape index: {}]
  %s2 = inlined_call_operand.vmem [shape: bf16[512,128], index: 2, kind: output, shape index: {0}]
  %s3 = inlined_call_operand.vmem [shape: f32[8,128], index: 3, kind: output, shape index: {1}]
  %s4 = inlined_call_operand.vmem [shape: f32[8,128], index: 4, kind: output, shape index: {2}]
  %5 = xla_tuple %s2, %s3, %s4
  %s6 = sld [smem:[#allocation0]]
  $region38: #{residual_block_forward.4} parent=0
    _
  %s8 = ssub.s32 1, %s6
  %s9 = scalar_select 0, %s8, %s6
  // Predicated region
  $region2: #{residual_block_forward.4} parent=0 // pred_check
    _
  $region3: #{residual_block_forward.4} parent=0 // pred_check_branch
    %11 = sbr.rel (0) target = $region5
  $region4: #{residual_block_forward.4} parent=0 // pred_region
    %s12 = sadd.s32 0, 0
    %s13 = smul.u32 64, %s12
    %p14 = scmp.lt.s32.totalorder %s13, 63
    %s15 = scalar_select %p14, %s13, 63
    %s16 = smul.addr %s15, 4
    %s17 = scalar_lea.vmem %s0, %s16
    %s18 = sadd.s32 0, 0
    %s19 = smul.u32 64, %s18
  $region5: #{residual_block_forward.4} parent=0 // pred_fallthru
    _
  // Predicated region
  $region6: #{residual_block_forward.4} parent=0 // pred_check
    _
  $region7: #{residual_block_forward.4} parent=0 // pred_check_branch
    %21 = sbr.rel (0) target = $region9
  $region8: #{residual_block_forward.4} parent=0 // pred_region
    _
  $region9: #{residual_block_forward.4} parent=0 // pred_fallthru
    _
  %s22 = sadd.s32 0, 0
  %s23 = smul.u32 64, %s22
  %p24 = scmp.lt.s32.totalorder %s23, 63
  %s25 = scalar_select %p24, %s23, 63
  %s26 = smul.addr %s25, 4
  %s27 = scalar_lea.vmem %s0, %s26
  %s28 = sadd.s32 0, 0
  %s29 = smul.u32 64, %s28
  %p30 = scmp.lt.s32.totalorder %s29, 63
  %s31 = scalar_select %p30, %s29, 63
  %s32 = smul.addr %s31, 4
  %s33 = scalar_lea.vmem %s2, %s32
  %s34 = sadd.s32 0, 0
  %s35 = smul.u32 64, %s34
  %p36 = scmp.lt.s32.totalorder %s35, 63
  %s37 = scalar_select %p36, %s35, 63
  %s38 = smul.addr %s37, 4
  %s39 = scalar_lea.vmem %s0, %s38
  %s40 = sadd.s32 0, 0
  %s41 = smul.u32 64, %s40
  %s42 = sadd.s32 0, 0
  %s43 = smul.u32 64, %s42
  %p44 = scmp.lt.s32.totalorder %s43, 63
  %s45 = scalar_select %p44, %s43, 63
  %s46 = smul.addr %s45, 4
  %s47 = scalar_lea.vmem %s2, %s46
  %s48 = sadd.s32 0, 0
  %s49 = smul.u32 64, %s48
  %p51 = scmp.eq.s32.totalorder 0, 0
  // Predicated region
  $region10: #{residual_block_forward.4} parent=0 // pred_check
    %p52 = pneg %p51
  $region11: #{residual_block_forward.4} parent=0 // pred_check_branch
    %54 = sbr.rel (%p52) target = $region13
  $region12: #{residual_block_forward.4} parent=0 // pred_region
    %55 = vst [vmem:[%s3] sm:$0xff] 0.0
    %56 = vst [vmem:[%s4] sm:$0xff] 0.0
  $region13: #{residual_block_forward.4} parent=0 // pred_fallthru
    _
  %v57 = vld [vmem:[%s39] sm:$0xf]
  %v58 = vld [vmem:[%s39 + $0x4] sm:$0xf]
  %v59 = vld [vmem:[%s39 + $0x8] sm:$0xf]
  %v60 = vld [vmem:[%s39 + $0xc] sm:$0xf]
  %v61 = vld [vmem:[%s39 + $0x10] sm:$0xf]
  %v62 = vld [vmem:[%s39 + $0x14] sm:$0xf]
  %v63 = vld [vmem:[%s39 + $0x18] sm:$0xf]
  %v64 = vld [vmem:[%s39 + $0x1c] sm:$0xf]
  %v65 = vld [vmem:[%s39 + $0x20] sm:$0xf]
  %v66 = vld [vmem:[%s39 + $0x24] sm:$0xf]
  %v67 = vld [vmem:[%s39 + $0x28] sm:$0xf]
  %v68 = vld [vmem:[%s39 + $0x2c] sm:$0xf]
  %v69 = vld [vmem:[%s39 + $0x30] sm:$0xf]
  %v70 = vld [vmem:[%s39 + $0x34] sm:$0xf]
  %v71 = vld [vmem:[%s39 + $0x38] sm:$0xf]
  %v72 = vld [vmem:[%s39 + $0x3c] sm:$0xf]
  %v73 = vld [vmem:[%s39 + $0x40] sm:$0xf]
  %v74 = vld [vmem:[%s39 + $0x44] sm:$0xf]
  %v75 = vld [vmem:[%s39 + $0x48] sm:$0xf]
  %v76 = vld [vmem:[%s39 + $0x4c] sm:$0xf]
  %v77 = vld [vmem:[%s39 + $0x50] sm:$0xf]
  %v78 = vld [vmem:[%s39 + $0x54] sm:$0xf]
  %v79 = vld [vmem:[%s39 + $0x58] sm:$0xf]
  %v80 = vld [vmem:[%s39 + $0x5c] sm:$0xf]
  %v81 = vld [vmem:[%s39 + $0x60] sm:$0xf]
  %v82 = vld [vmem:[%s39 + $0x64] sm:$0xf]
  %v83 = vld [vmem:[%s39 + $0x68] sm:$0xf]
  %v84 = vld [vmem:[%s39 + $0x6c] sm:$0xf]
  %v85 = vld [vmem:[%s39 + $0x70] sm:$0xf]
  %v86 = vld [vmem:[%s39 + $0x74] sm:$0xf]
  %v87 = vld [vmem:[%s39 + $0x78] sm:$0xf]
  %v88 = vld [vmem:[%s39 + $0x7c] sm:$0xf]
  %v89 = vld [vmem:[%s39 + $0x80] sm:$0xf]
  %v90 = vld [vmem:[%s39 + $0x84] sm:$0xf]
  %v91 = vld [vmem:[%s39 + $0x88] sm:$0xf]
  %v92 = vld [vmem:[%s39 + $0x8c] sm:$0xf]
  %v93 = vld [vmem:[%s39 + $0x90] sm:$0xf]
  %v94 = vld [vmem:[%s39 + $0x94] sm:$0xf]
  %v95 = vld [vmem:[%s39 + $0x98] sm:$0xf]
  %v96 = vld [vmem:[%s39 + $0x9c] sm:$0xf]
  %v97 = vld [vmem:[%s39 + $0xa0] sm:$0xf]
  %v98 = vld [vmem:[%s39 + $0xa4] sm:$0xf]
  %v99 = vld [vmem:[%s39 + $0xa8] sm:$0xf]
  %v100 = vld [vmem:[%s39 + $0xac] sm:$0xf]
  %v101 = vld [vmem:[%s39 + $0xb0] sm:$0xf]
  %v102 = vld [vmem:[%s39 + $0xb4] sm:$0xf]
  %v103 = vld [vmem:[%s39 + $0xb8] sm:$0xf]
  %v104 = vld [vmem:[%s39 + $0xbc] sm:$0xf]
  %v105 = vld [vmem:[%s39 + $0xc0] sm:$0xf]
  %v106 = vld [vmem:[%s39 + $0xc4] sm:$0xf]
  %v107 = vld [vmem:[%s39 + $0xc8] sm:$0xf]
  %v108 = vld [vmem:[%s39 + $0xcc] sm:$0xf]
  %v109 = vld [vmem:[%s39 + $0xd0] sm:$0xf]
  %v110 = vld [vmem:[%s39 + $0xd4] sm:$0xf]
  %v111 = vld [vmem:[%s39 + $0xd8] sm:$0xf]
  %v112 = vld [vmem:[%s39 + $0xdc] sm:$0xf]
  %v113 = vld [vmem:[%s39 + $0xe0] sm:$0xf]
  %v114 = vld [vmem:[%s39 + $0xe4] sm:$0xf]
  %v115 = vld [vmem:[%s39 + $0xe8] sm:$0xf]
  %v116 = vld [vmem:[%s39 + $0xec] sm:$0xf]
  %v117 = vld [vmem:[%s39 + $0xf0] sm:$0xf]
  %v118 = vld [vmem:[%s39 + $0xf4] sm:$0xf]
  %v119 = vld [vmem:[%s39 + $0xf8] sm:$0xf]
  %v120 = vld [vmem:[%s39 + $0xfc] sm:$0xf]
  %v121 = vld [vmem:[%s1] sm:$0xf]
  %v122 = vld [vmem:[%s1 + $0x4] sm:$0xf]
  %v123 = vld [vmem:[%s1 + $0x8] sm:$0xf]
  %v124 = vld [vmem:[%s1 + $0xc] sm:$0xf]
  %v125 = vld [vmem:[%s1 + $0x10] sm:$0x3]
  %v190 = vunpack.c.l.b16 %v57
  %v191 = vunpack.c.l.b16 %v58
  %v192 = vunpack.c.l.b16 %v59
  %v193 = vunpack.c.l.b16 %v60
  %v194 = vunpack.c.l.b16 %v61
  %v195 = vunpack.c.l.b16 %v62
  %v196 = vunpack.c.l.b16 %v63
  %v197 = vunpack.c.l.b16 %v64
  %v198 = vunpack.c.l.b16 %v65
  %v199 = vunpack.c.l.b16 %v66
  %v200 = vunpack.c.l.b16 %v67
  %v201 = vunpack.c.l.b16 %v68
  %v202 = vunpack.c.l.b16 %v69
  %v203 = vunpack.c.l.b16 %v70
  %v204 = vunpack.c.l.b16 %v71
  %v205 = vunpack.c.l.b16 %v72
  %v206 = vunpack.c.l.b16 %v73
  %v207 = vunpack.c.l.b16 %v74
  %v208 = vunpack.c.l.b16 %v75
  %v209 = vunpack.c.l.b16 %v76
  %v210 = vunpack.c.l.b16 %v77
  %v211 = vunpack.c.l.b16 %v78
  %v212 = vunpack.c.l.b16 %v79
  %v213 = vunpack.c.l.b16 %v80
  %v214 = vunpack.c.l.b16 %v81
  %v215 = vunpack.c.l.b16 %v82
  %v216 = vunpack.c.l.b16 %v83
  %v217 = vunpack.c.l.b16 %v84
  %v218 = vunpack.c.l.b16 %v85
  %v219 = vunpack.c.l.b16 %v86
  %v220 = vunpack.c.l.b16 %v87
  %v221 = vunpack.c.l.b16 %v88
  %v222 = vunpack.c.l.b16 %v89
  %v223 = vunpack.c.l.b16 %v90
  %v224 = vunpack.c.l.b16 %v91
  %v225 = vunpack.c.l.b16 %v92
  %v226 = vunpack.c.l.b16 %v93
  %v227 = vunpack.c.l.b16 %v94
  %v228 = vunpack.c.l.b16 %v95
  %v229 = vunpack.c.l.b16 %v96
  %v230 = vunpack.c.l.b16 %v97
  %v231 = vunpack.c.l.b16 %v98
  %v232 = vunpack.c.l.b16 %v99
  %v233 = vunpack.c.l.b16 %v100
  %v234 = vunpack.c.l.b16 %v101
  %v235 = vunpack.c.l.b16 %v102
  %v236 = vunpack.c.l.b16 %v103
  %v237 = vunpack.c.l.b16 %v104
  %v238 = vunpack.c.l.b16 %v105
  %v239 = vunpack.c.l.b16 %v106
  %v240 = vunpack.c.l.b16 %v107
  %v241 = vunpack.c.l.b16 %v108
  %v242 = vunpack.c.l.b16 %v109
  %v243 = vunpack.c.l.b16 %v110
  %v244 = vunpack.c.l.b16 %v111
  %v245 = vunpack.c.l.b16 %v112
  %v246 = vunpack.c.l.b16 %v113
  %v247 = vunpack.c.l.b16 %v114
  %v248 = vunpack.c.l.b16 %v115
  %v249 = vunpack.c.l.b16 %v116
  %v250 = vunpack.c.l.b16 %v117
  %v251 = vunpack.c.l.b16 %v118
  %v252 = vunpack.c.l.b16 %v119
  %v253 = vunpack.c.l.b16 %v120
  %v254 = vpack.c.b16 %v191, %v190
  %v255 = vpack.c.b16 %v193, %v192
  %v256 = vpack.c.b16 %v195, %v194
  %v257 = vpack.c.b16 %v197, %v196
  %v258 = vpack.c.b16 %v199, %v198
  %v259 = vpack.c.b16 %v201, %v200
  %v260 = vpack.c.b16 %v203, %v202
  %v261 = vpack.c.b16 %v205, %v204
  %v262 = vpack.c.b16 %v207, %v206
  %v263 = vpack.c.b16 %v209, %v208
  %v264 = vpack.c.b16 %v211, %v210
  %v265 = vpack.c.b16 %v213, %v212
  %v266 = vpack.c.b16 %v215, %v214
  %v267 = vpack.c.b16 %v217, %v216
  %v268 = vpack.c.b16 %v219, %v218
  %v269 = vpack.c.b16 %v221, %v220
  %v270 = vpack.c.b16 %v223, %v222
  %v271 = vpack.c.b16 %v225, %v224
  %v272 = vpack.c.b16 %v227, %v226
  %v273 = vpack.c.b16 %v229, %v228
  %v274 = vpack.c.b16 %v231, %v230
  %v275 = vpack.c.b16 %v233, %v232
  %v276 = vpack.c.b16 %v235, %v234
  %v277 = vpack.c.b16 %v237, %v236
  %v278 = vpack.c.b16 %v239, %v238
  %v279 = vpack.c.b16 %v241, %v240
  %v280 = vpack.c.b16 %v243, %v242
  %v281 = vpack.c.b16 %v245, %v244
  %v282 = vpack.c.b16 %v247, %v246
  %v283 = vpack.c.b16 %v249, %v248
  %v284 = vpack.c.b16 %v251, %v250
  %v285 = vpack.c.b16 %v253, %v252
  %v291 = vunpack.c.l.b16 %v121
  %v292 = vunpack.c.l.b16 %v122
  %v293 = vunpack.c.l.b16 %v123
  %v294 = vunpack.c.l.b16 %v124
  %v295 = vunpack.c.l.b16 %v125
  %v296 = vpack.c.b16 %v292, %v291
  %v297 = vpack.c.b16 %v294, %v293
  %v298 = vpack.c.b16 %v295, %v295
  %vm301 = vcmask 293888
  %v303 = vsel %vm301, %v254, 0
  %v306 = vsel %vm301, %v255, 0
  %v309 = vsel %vm301, %v256, 0
  %v312 = vsel %vm301, %v257, 0
  %v315 = vsel %vm301, %v258, 0
  %v318 = vsel %vm301, %v259, 0
  %v321 = vsel %vm301, %v260, 0
  %v324 = vsel %vm301, %v261, 0
  %v327 = vsel %vm301, %v262, 0
  %v330 = vsel %vm301, %v263, 0
  %v333 = vsel %vm301, %v264, 0
  %v336 = vsel %vm301, %v265, 0
  %v339 = vsel %vm301, %v266, 0
  %v342 = vsel %vm301, %v267, 0
  %v345 = vsel %vm301, %v268, 0
  %v348 = vsel %vm301, %v269, 0
  %v351 = vsel %vm301, %v270, 0
  %v354 = vsel %vm301, %v271, 0
  %v357 = vsel %vm301, %v272, 0
  %v360 = vsel %vm301, %v273, 0
  %v363 = vsel %vm301, %v274, 0
  %v366 = vsel %vm301, %v275, 0
  %v369 = vsel %vm301, %v276, 0
  %v372 = vsel %vm301, %v277, 0
  %v375 = vsel %vm301, %v278, 0
  %v378 = vsel %vm301, %v279, 0
  %v381 = vsel %vm301, %v280, 0
  %v384 = vsel %vm301, %v281, 0
  %v387 = vsel %vm301, %v282, 0
  %v390 = vsel %vm301, %v283, 0
  %v393 = vsel %vm301, %v284, 0
  %v396 = vsel %vm301, %v285, 0
  %vm398 = vcmask 1041408
  %v400 = vsel %vm398, %v298, 0
  %402 = vmatpush.bf16.msra.mxu0 0
  %403 = vmatpush.bf16.msra.mxu0 0
  %404 = vmatpush.bf16.msra.mxu0 0
  %405 = vmatpush.bf16.msra.mxu0 0
  %406 = vmatpush.bf16.msra.mxu0 0
  %407 = vmatpush.bf16.msra.mxu0 %v400
  %408 = vmatpush.bf16.msra.mxu0 %v297
  %409 = vmatpush.bf16.msra.mxu0 %v296
  %410 = vmatmul.bf16.gmra.mxu0 %v303
  %v411 = vpop.f32.mrf.mxu0
  %v412 = vadd.f32 0.0, %v411
  %v413 = vpop.f32.mrf.mxu0
  %v414 = vadd.f32 0.0, %v413
  %415 = vmatmul.bf16.gmra.mxu0 %v306
  %v416 = vpop.f32.mrf.mxu0
  %v417 = vadd.f32 0.0, %v416
  %v418 = vpop.f32.mrf.mxu0
  %v419 = vadd.f32 0.0, %v418
  %420 = vmatmul.bf16.gmra.mxu0 %v309
  %v421 = vpop.f32.mrf.mxu0
  %v422 = vadd.f32 0.0, %v421
  %v423 = vpop.f32.mrf.mxu0
  %v424 = vadd.f32 0.0, %v423
  %425 = vmatmul.bf16.gmra.mxu0 %v312
  %v426 = vpop.f32.mrf.mxu0
  %v427 = vadd.f32 0.0, %v426
  %v428 = vpop.f32.mrf.mxu0
  %v429 = vadd.f32 0.0, %v428
  %430 = vmatmul.bf16.gmra.mxu0 %v315
  %v431 = vpop.f32.mrf.mxu0
  %v432 = vadd.f32 0.0, %v431
  %v433 = vpop.f32.mrf.mxu0
  %v434 = vadd.f32 0.0, %v433
  %435 = vmatmul.bf16.gmra.mxu0 %v318
  %v436 = vpop.f32.mrf.mxu0
  %v437 = vadd.f32 0.0, %v436
  %v438 = vpop.f32.mrf.mxu0
  %v439 = vadd.f32 0.0, %v438
  %440 = vmatmul.bf16.gmra.mxu0 %v321
  %v441 = vpop.f32.mrf.mxu0
  %v442 = vadd.f32 0.0, %v441
  %v443 = vpop.f32.mrf.mxu0
  %v444 = vadd.f32 0.0, %v443
  %445 = vmatmul.bf16.gmra.mxu0 %v324
  %v446 = vpop.f32.mrf.mxu0
  %v447 = vadd.f32 0.0, %v446
  %v448 = vpop.f32.mrf.mxu0
  %v449 = vadd.f32 0.0, %v448
  %450 = vmatmul.bf16.gmra.mxu0 %v327
  %v451 = vpop.f32.mrf.mxu0
  %v452 = vadd.f32 0.0, %v451
  %v453 = vpop.f32.mrf.mxu0
  %v454 = vadd.f32 0.0, %v453
  %455 = vmatmul.bf16.gmra.mxu0 %v330
  %v456 = vpop.f32.mrf.mxu0
  %v457 = vadd.f32 0.0, %v456
  %v458 = vpop.f32.mrf.mxu0
  %v459 = vadd.f32 0.0, %v458
  %460 = vmatmul.bf16.gmra.mxu0 %v333
  %v461 = vpop.f32.mrf.mxu0
  %v462 = vadd.f32 0.0, %v461
  %v463 = vpop.f32.mrf.mxu0
  %v464 = vadd.f32 0.0, %v463
  %465 = vmatmul.bf16.gmra.mxu0 %v336
  %v466 = vpop.f32.mrf.mxu0
  %v467 = vadd.f32 0.0, %v466
  %v468 = vpop.f32.mrf.mxu0
  %v469 = vadd.f32 0.0, %v468
  %470 = vmatmul.bf16.gmra.mxu0 %v339
  %v471 = vpop.f32.mrf.mxu0
  %v472 = vadd.f32 0.0, %v471
  %v473 = vpop.f32.mrf.mxu0
  %v474 = vadd.f32 0.0, %v473
  %475 = vmatmul.bf16.gmra.mxu0 %v342
  %v476 = vpop.f32.mrf.mxu0
  %v477 = vadd.f32 0.0, %v476
  %v478 = vpop.f32.mrf.mxu0
  %v479 = vadd.f32 0.0, %v478
  %480 = vmatmul.bf16.gmra.mxu0 %v345
  %v481 = vpop.f32.mrf.mxu0
  %v482 = vadd.f32 0.0, %v481
  %v483 = vpop.f32.mrf.mxu0
  %v484 = vadd.f32 0.0, %v483
  %485 = vmatmul.bf16.gmra.mxu0 %v348
  %v486 = vpop.f32.mrf.mxu0
  %v487 = vadd.f32 0.0, %v486
  %v488 = vpop.f32.mrf.mxu0
  %v489 = vadd.f32 0.0, %v488
  %490 = vmatmul.bf16.gmra.mxu0 %v351
  %v491 = vpop.f32.mrf.mxu0
  %v492 = vadd.f32 0.0, %v491
  %v493 = vpop.f32.mrf.mxu0
  %v494 = vadd.f32 0.0, %v493
  %495 = vmatmul.bf16.gmra.mxu0 %v354
  %v496 = vpop.f32.mrf.mxu0
  %v497 = vadd.f32 0.0, %v496
  %v498 = vpop.f32.mrf.mxu0
  %v499 = vadd.f32 0.0, %v498
  %500 = vmatmul.bf16.gmra.mxu0 %v357
  %v501 = vpop.f32.mrf.mxu0
  %v502 = vadd.f32 0.0, %v501
  %v503 = vpop.f32.mrf.mxu0
  %v504 = vadd.f32 0.0, %v503
  %505 = vmatmul.bf16.gmra.mxu0 %v360
  %v506 = vpop.f32.mrf.mxu0
  %v507 = vadd.f32 0.0, %v506
  %v508 = vpop.f32.mrf.mxu0
  %v509 = vadd.f32 0.0, %v508
  %510 = vmatmul.bf16.gmra.mxu0 %v363
  %v511 = vpop.f32.mrf.mxu0
  %v512 = vadd.f32 0.0, %v511
  %v513 = vpop.f32.mrf.mxu0
  %v514 = vadd.f32 0.0, %v513
  %515 = vmatmul.bf16.gmra.mxu0 %v366
  %v516 = vpop.f32.mrf.mxu0
  %v517 = vadd.f32 0.0, %v516
  %v518 = vpop.f32.mrf.mxu0
  %v519 = vadd.f32 0.0, %v518
  %520 = vmatmul.bf16.gmra.mxu0 %v369
  %v521 = vpop.f32.mrf.mxu0
  %v522 = vadd.f32 0.0, %v521
  %v523 = vpop.f32.mrf.mxu0
  %v524 = vadd.f32 0.0, %v523
  %525 = vmatmul.bf16.gmra.mxu0 %v372
  %v526 = vpop.f32.mrf.mxu0
  %v527 = vadd.f32 0.0, %v526
  %v528 = vpop.f32.mrf.mxu0
  %v529 = vadd.f32 0.0, %v528
  %530 = vmatmul.bf16.gmra.mxu0 %v375
  %v531 = vpop.f32.mrf.mxu0
  %v532 = vadd.f32 0.0, %v531
  %v533 = vpop.f32.mrf.mxu0
  %v534 = vadd.f32 0.0, %v533
  %535 = vmatmul.bf16.gmra.mxu0 %v378
  %v536 = vpop.f32.mrf.mxu0
  %v537 = vadd.f32 0.0, %v536
  %v538 = vpop.f32.mrf.mxu0
  %v539 = vadd.f32 0.0, %v538
  %540 = vmatmul.bf16.gmra.mxu0 %v381
  %v541 = vpop.f32.mrf.mxu0
  %v542 = vadd.f32 0.0, %v541
  %v543 = vpop.f32.mrf.mxu0
  %v544 = vadd.f32 0.0, %v543
  %545 = vmatmul.bf16.gmra.mxu0 %v384
  %v546 = vpop.f32.mrf.mxu0
  %v547 = vadd.f32 0.0, %v546
  %v548 = vpop.f32.mrf.mxu0
  %v549 = vadd.f32 0.0, %v548
  %550 = vmatmul.bf16.gmra.mxu0 %v387
  %v551 = vpop.f32.mrf.mxu0
  %v552 = vadd.f32 0.0, %v551
  %v553 = vpop.f32.mrf.mxu0
  %v554 = vadd.f32 0.0, %v553
  %555 = vmatmul.bf16.gmra.mxu0 %v390
  %v556 = vpop.f32.mrf.mxu0
  %v557 = vadd.f32 0.0, %v556
  %v558 = vpop.f32.mrf.mxu0
  %v559 = vadd.f32 0.0, %v558
  %560 = vmatmul.bf16.gmra.mxu0 %v393
  %v561 = vpop.f32.mrf.mxu0
  %v562 = vadd.f32 0.0, %v561
  %v563 = vpop.f32.mrf.mxu0
  %v564 = vadd.f32 0.0, %v563
  %565 = vmatmul.bf16.gmra.mxu0 %v396
  %v566 = vpop.f32.mrf.mxu0
  %v567 = vadd.f32 0.0, %v566
  %v568 = vpop.f32.mrf.mxu0
  %v569 = vadd.f32 0.0, %v568
  %570 = vdwg.mxu0
  %v571 = vpack.c.bf16 %v412, %v412
  %v572 = vpack.c.bf16 %v414, %v414
  %v573 = vpack.c.bf16 %v417, %v417
  %v574 = vpack.c.bf16 %v419, %v419
  %v575 = vpack.c.bf16 %v422, %v422
  %v576 = vpack.c.bf16 %v424, %v424
  %v577 = vpack.c.bf16 %v427, %v427
  %v578 = vpack.c.bf16 %v429, %v429
  %v579 = vpack.c.bf16 %v432, %v432
  %v580 = vpack.c.bf16 %v434, %v434
  %v581 = vpack.c.bf16 %v437, %v437
  %v582 = vpack.c.bf16 %v439, %v439
  %v583 = vpack.c.bf16 %v442, %v442
  %v584 = vpack.c.bf16 %v444, %v444
  %v585 = vpack.c.bf16 %v447, %v447
  %v586 = vpack.c.bf16 %v449, %v449
  %v587 = vpack.c.bf16 %v452, %v452
  %v588 = vpack.c.bf16 %v454, %v454
  %v589 = vpack.c.bf16 %v457, %v457
  %v590 = vpack.c.bf16 %v459, %v459
  %v591 = vpack.c.bf16 %v462, %v462
  %v592 = vpack.c.bf16 %v464, %v464
  %v593 = vpack.c.bf16 %v467, %v467
  %v594 = vpack.c.bf16 %v469, %v469
  %v595 = vpack.c.bf16 %v472, %v472
  %v596 = vpack.c.bf16 %v474, %v474
  %v597 = vpack.c.bf16 %v477, %v477
  %v598 = vpack.c.bf16 %v479, %v479
  %v599 = vpack.c.bf16 %v482, %v482
  %v600 = vpack.c.bf16 %v484, %v484
  %v601 = vpack.c.bf16 %v487, %v487
  %v602 = vpack.c.bf16 %v489, %v489
  %v603 = vpack.c.bf16 %v492, %v492
  %v604 = vpack.c.bf16 %v494, %v494
  %v605 = vpack.c.bf16 %v497, %v497
  %v606 = vpack.c.bf16 %v499, %v499
  %v607 = vpack.c.bf16 %v502, %v502
  %v608 = vpack.c.bf16 %v504, %v504
  %v609 = vpack.c.bf16 %v507, %v507
  %v610 = vpack.c.bf16 %v509, %v509
  %v611 = vpack.c.bf16 %v512, %v512
  %v612 = vpack.c.bf16 %v514, %v514
  %v613 = vpack.c.bf16 %v517, %v517
  %v614 = vpack.c.bf16 %v519, %v519
  %v615 = vpack.c.bf16 %v522, %v522
  %v616 = vpack.c.bf16 %v524, %v524
  %v617 = vpack.c.bf16 %v527, %v527
  %v618 = vpack.c.bf16 %v529, %v529
  %v619 = vpack.c.bf16 %v532, %v532
  %v620 = vpack.c.bf16 %v534, %v534
  %v621 = vpack.c.bf16 %v537, %v537
  %v622 = vpack.c.bf16 %v539, %v539
  %v623 = vpack.c.bf16 %v542, %v542
  %v624 = vpack.c.bf16 %v544, %v544
  %v625 = vpack.c.bf16 %v547, %v547
  %v626 = vpack.c.bf16 %v549, %v549
  %v627 = vpack.c.bf16 %v552, %v552
  %v628 = vpack.c.bf16 %v554, %v554
  %v629 = vpack.c.bf16 %v557, %v557
  %v630 = vpack.c.bf16 %v559, %v559
  %v631 = vpack.c.bf16 %v562, %v562
  %v632 = vpack.c.bf16 %v564, %v564
  %v633 = vpack.c.bf16 %v567, %v567
  %v634 = vpack.c.bf16 %v569, %v569
  %635 = vst [vmem:[%s47] sm:$0xf] %v571
  %636 = vst [vmem:[%s47 + $0x4] sm:$0xf] %v572
  %637 = vst [vmem:[%s47 + $0x8] sm:$0xf] %v573
  %638 = vst [vmem:[%s47 + $0xc] sm:$0xf] %v574
  %639 = vst [vmem:[%s47 + $0x10] sm:$0xf] %v575
  %640 = vst [vmem:[%s47 + $0x14] sm:$0xf] %v576
  %641 = vst [vmem:[%s47 + $0x18] sm:$0xf] %v577
  %642 = vst [vmem:[%s47 + $0x1c] sm:$0xf] %v578
  %643 = vst [vmem:[%s47 + $0x20] sm:$0xf] %v579
  %644 = vst [vmem:[%s47 + $0x24] sm:$0xf] %v580
  %645 = vst [vmem:[%s47 + $0x28] sm:$0xf] %v581
  %646 = vst [vmem:[%s47 + $0x2c] sm:$0xf] %v582
  %647 = vst [vmem:[%s47 + $0x30] sm:$0xf] %v583
  %648 = vst [vmem:[%s47 + $0x34] sm:$0xf] %v584
  %649 = vst [vmem:[%s47 + $0x38] sm:$0xf] %v585
  %650 = vst [vmem:[%s47 + $0x3c] sm:$0xf] %v586
  %651 = vst [vmem:[%s47 + $0x40] sm:$0xf] %v587
  %652 = vst [vmem:[%s47 + $0x44] sm:$0xf] %v588
  %653 = vst [vmem:[%s47 + $0x48] sm:$0xf] %v589
  %654 = vst [vmem:[%s47 + $0x4c] sm:$0xf] %v590
  %655 = vst [vmem:[%s47 + $0x50] sm:$0xf] %v591
  %656 = vst [vmem:[%s47 + $0x54] sm:$0xf] %v592
  %657 = vst [vmem:[%s47 + $0x58] sm:$0xf] %v593
  %658 = vst [vmem:[%s47 + $0x5c] sm:$0xf] %v594
  %659 = vst [vmem:[%s47 + $0x60] sm:$0xf] %v595
  %660 = vst [vmem:[%s47 + $0x64] sm:$0xf] %v596
  %661 = vst [vmem:[%s47 + $0x68] sm:$0xf] %v597
  %662 = vst [vmem:[%s47 + $0x6c] sm:$0xf] %v598
  %663 = vst [vmem:[%s47 + $0x70] sm:$0xf] %v599
  %664 = vst [vmem:[%s47 + $0x74] sm:$0xf] %v600
  %665 = vst [vmem:[%s47 + $0x78] sm:$0xf] %v601
  %666 = vst [vmem:[%s47 + $0x7c] sm:$0xf] %v602
  %667 = vst [vmem:[%s47 + $0x80] sm:$0xf] %v603
  %668 = vst [vmem:[%s47 + $0x84] sm:$0xf] %v604
  %669 = vst [vmem:[%s47 + $0x88] sm:$0xf] %v605
  %670 = vst [vmem:[%s47 + $0x8c] sm:$0xf] %v606
  %671 = vst [vmem:[%s47 + $0x90] sm:$0xf] %v607
  %672 = vst [vmem:[%s47 + $0x94] sm:$0xf] %v608
  %673 = vst [vmem:[%s47 + $0x98] sm:$0xf] %v609
  %674 = vst [vmem:[%s47 + $0x9c] sm:$0xf] %v610
  %675 = vst [vmem:[%s47 + $0xa0] sm:$0xf] %v611
  %676 = vst [vmem:[%s47 + $0xa4] sm:$0xf] %v612
  %677 = vst [vmem:[%s47 + $0xa8] sm:$0xf] %v613
  %678 = vst [vmem:[%s47 + $0xac] sm:$0xf] %v614
  %679 = vst [vmem:[%s47 + $0xb0] sm:$0xf] %v615
  %680 = vst [vmem:[%s47 + $0xb4] sm:$0xf] %v616
  %681 = vst [vmem:[%s47 + $0xb8] sm:$0xf] %v617
  %682 = vst [vmem:[%s47 + $0xbc] sm:$0xf] %v618
  %683 = vst [vmem:[%s47 + $0xc0] sm:$0xf] %v619
  %684 = vst [vmem:[%s47 + $0xc4] sm:$0xf] %v620
  %685 = vst [vmem:[%s47 + $0xc8] sm:$0xf] %v621
  %686 = vst [vmem:[%s47 + $0xcc] sm:$0xf] %v622
  %687 = vst [vmem:[%s47 + $0xd0] sm:$0xf] %v623
  %688 = vst [vmem:[%s47 + $0xd4] sm:$0xf] %v624
  %689 = vst [vmem:[%s47 + $0xd8] sm:$0xf] %v625
  %690 = vst [vmem:[%s47 + $0xdc] sm:$0xf] %v626
  %691 = vst [vmem:[%s47 + $0xe0] sm:$0xf] %v627
  %692 = vst [vmem:[%s47 + $0xe4] sm:$0xf] %v628
  %693 = vst [vmem:[%s47 + $0xe8] sm:$0xf] %v629
  %694 = vst [vmem:[%s47 + $0xec] sm:$0xf] %v630
  %695 = vst [vmem:[%s47 + $0xf0] sm:$0xf] %v631
  %696 = vst [vmem:[%s47 + $0xf4] sm:$0xf] %v632
  %697 = vst [vmem:[%s47 + $0xf8] sm:$0xf] %v633
  %698 = vst [vmem:[%s47 + $0xfc] sm:$0xf] %v634
  %v699 = vld [vmem:[%s3] sm:$0xff]
  %v700 = vadd.f32 %v412, %v414
  %v701 = vadd.f32 %v700, %v417
  %v702 = vadd.f32 %v701, %v419
  %v703 = vadd.f32 %v702, %v422
  %v704 = vadd.f32 %v703, %v424
  %v705 = vadd.f32 %v704, %v427
  %v706 = vadd.f32 %v705, %v429
  %v707 = vadd.f32 %v706, %v432
  %v708 = vadd.f32 %v707, %v434
  %v709 = vadd.f32 %v708, %v437
  %v710 = vadd.f32 %v709, %v439
  %v711 = vadd.f32 %v710, %v442
  %v712 = vadd.f32 %v711, %v444
  %v713 = vadd.f32 %v712, %v447
  %v714 = vadd.f32 %v713, %v449
  %v715 = vadd.f32 %v714, %v452
  %v716 = vadd.f32 %v715, %v454
  %v717 = vadd.f32 %v716, %v457
  %v718 = vadd.f32 %v717, %v459
  %v719 = vadd.f32 %v718, %v462
  %v720 = vadd.f32 %v719, %v464
  %v721 = vadd.f32 %v720, %v467
  %v722 = vadd.f32 %v721, %v469
  %v723 = vadd.f32 %v722, %v472
  %v724 = vadd.f32 %v723, %v474
  %v725 = vadd.f32 %v724, %v477
  %v726 = vadd.f32 %v725, %v479
  %v727 = vadd.f32 %v726, %v482
  %v728 = vadd.f32 %v727, %v484
  %v729 = vadd.f32 %v728, %v487
  %v730 = vadd.f32 %v729, %v489
  %v731 = vadd.f32 %v730, %v492
  %v732 = vadd.f32 %v731, %v494
  %v733 = vadd.f32 %v732, %v497
  %v734 = vadd.f32 %v733, %v499
  %v735 = vadd.f32 %v734, %v502
  %v736 = vadd.f32 %v735, %v504
  %v737 = vadd.f32 %v736, %v507
  %v738 = vadd.f32 %v737, %v509
  %v739 = vadd.f32 %v738, %v512
  %v740 = vadd.f32 %v739, %v514
  %v741 = vadd.f32 %v740, %v517
  %v742 = vadd.f32 %v741, %v519
  %v743 = vadd.f32 %v742, %v522
  %v744 = vadd.f32 %v743, %v524
  %v745 = vadd.f32 %v744, %v527
  %v746 = vadd.f32 %v745, %v529
  %v747 = vadd.f32 %v746, %v532
  %v748 = vadd.f32 %v747, %v534
  %v749 = vadd.f32 %v748, %v537
  %v750 = vadd.f32 %v749, %v539
  %v751 = vadd.f32 %v750, %v542
  %v752 = vadd.f32 %v751, %v544
  %v753 = vadd.f32 %v752, %v547
  %v754 = vadd.f32 %v753, %v549
  %v755 = vadd.f32 %v754, %v552
  %v756 = vadd.f32 %v755, %v554
  %v757 = vadd.f32 %v756, %v557
  %v758 = vadd.f32 %v757, %v559
  %v759 = vadd.f32 %v758, %v562
  %v760 = vadd.f32 %v759, %v564
  %v761 = vadd.f32 %v760, %v567
  %v762 = vadd.f32 %v761, %v569
  %v763 = vadd.f32 %v699, %v762
  %764 = vst [vmem:[%s3] sm:$0xff] %v763
  %v765 = vld [vmem:[%s4] sm:$0xff]
  %v766 = vmul.f32 %v412, %v412
  %v767 = vmul.f32 %v414, %v414
  %v768 = vmul.f32 %v417, %v417
  %v769 = vmul.f32 %v419, %v419
  %v770 = vmul.f32 %v422, %v422
  %v771 = vmul.f32 %v424, %v424
  %v772 = vmul.f32 %v427, %v427
  %v773 = vmul.f32 %v429, %v429
  %v774 = vmul.f32 %v432, %v432
  %v775 = vmul.f32 %v434, %v434
  %v776 = vmul.f32 %v437, %v437
  %v777 = vmul.f32 %v439, %v439
  %v778 = vmul.f32 %v442, %v442
  %v779 = vmul.f32 %v444, %v444
  %v780 = vmul.f32 %v447, %v447
  %v781 = vmul.f32 %v449, %v449
  %v782 = vmul.f32 %v452, %v452
  %v783 = vmul.f32 %v454, %v454
  %v784 = vmul.f32 %v457, %v457
  %v785 = vmul.f32 %v459, %v459
  %v786 = vmul.f32 %v462, %v462
  %v787 = vmul.f32 %v464, %v464
  %v788 = vmul.f32 %v467, %v467
  %v789 = vmul.f32 %v469, %v469
  %v790 = vmul.f32 %v472, %v472
  %v791 = vmul.f32 %v474, %v474
  %v792 = vmul.f32 %v477, %v477
  %v793 = vmul.f32 %v479, %v479
  %v794 = vmul.f32 %v482, %v482
  %v795 = vmul.f32 %v484, %v484
  %v796 = vmul.f32 %v487, %v487
  %v797 = vmul.f32 %v489, %v489
  %v798 = vmul.f32 %v492, %v492
  %v799 = vmul.f32 %v494, %v494
  %v800 = vmul.f32 %v497, %v497
  %v801 = vmul.f32 %v499, %v499
  %v802 = vmul.f32 %v502, %v502
  %v803 = vmul.f32 %v504, %v504
  %v804 = vmul.f32 %v507, %v507
  %v805 = vmul.f32 %v509, %v509
  %v806 = vmul.f32 %v512, %v512
  %v807 = vmul.f32 %v514, %v514
  %v808 = vmul.f32 %v517, %v517
  %v809 = vmul.f32 %v519, %v519
  %v810 = vmul.f32 %v522, %v522
  %v811 = vmul.f32 %v524, %v524
  %v812 = vmul.f32 %v527, %v527
  %v813 = vmul.f32 %v529, %v529
  %v814 = vmul.f32 %v532, %v532
  %v815 = vmul.f32 %v534, %v534
  %v816 = vmul.f32 %v537, %v537
  %v817 = vmul.f32 %v539, %v539
  %v818 = vmul.f32 %v542, %v542
  %v819 = vmul.f32 %v544, %v544
  %v820 = vmul.f32 %v547, %v547
  %v821 = vmul.f32 %v549, %v549
  %v822 = vmul.f32 %v552, %v552
  %v823 = vmul.f32 %v554, %v554
  %v824 = vmul.f32 %v557, %v557
  %v825 = vmul.f32 %v559, %v559
  %v826 = vmul.f32 %v562, %v562
  %v827 = vmul.f32 %v564, %v564
  %v828 = vmul.f32 %v567, %v567
  %v829 = vmul.f32 %v569, %v569
  %v830 = vadd.f32 %v766, %v767
  %v831 = vadd.f32 %v830, %v768
  %v832 = vadd.f32 %v831, %v769
  %v833 = vadd.f32 %v832, %v770
  %v834 = vadd.f32 %v833, %v771
  %v835 = vadd.f32 %v834, %v772
  %v836 = vadd.f32 %v835, %v773
  %v837 = vadd.f32 %v836, %v774
  %v838 = vadd.f32 %v837, %v775
  %v839 = vadd.f32 %v838, %v776
  %v840 = vadd.f32 %v839, %v777
  %v841 = vadd.f32 %v840, %v778
  %v842 = vadd.f32 %v841, %v779
  %v843 = vadd.f32 %v842, %v780
  %v844 = vadd.f32 %v843, %v781
  %v845 = vadd.f32 %v844, %v782
  %v846 = vadd.f32 %v845, %v783
  %v847 = vadd.f32 %v846, %v784
  %v848 = vadd.f32 %v847, %v785
  %v849 = vadd.f32 %v848, %v786
  %v850 = vadd.f32 %v849, %v787
  %v851 = vadd.f32 %v850, %v788
  %v852 = vadd.f32 %v851, %v789
  %v853 = vadd.f32 %v852, %v790
  %v854 = vadd.f32 %v853, %v791
  %v855 = vadd.f32 %v854, %v792
  %v856 = vadd.f32 %v855, %v793
  %v857 = vadd.f32 %v856, %v794
  %v858 = vadd.f32 %v857, %v795
  %v859 = vadd.f32 %v858, %v796
  %v860 = vadd.f32 %v859, %v797
  %v861 = vadd.f32 %v860, %v798
  %v862 = vadd.f32 %v861, %v799
  %v863 = vadd.f32 %v862, %v800
  %v864 = vadd.f32 %v863, %v801
  %v865 = vadd.f32 %v864, %v802
  %v866 = vadd.f32 %v865, %v803
  %v867 = vadd.f32 %v866, %v804
  %v868 = vadd.f32 %v867, %v805
  %v869 = vadd.f32 %v868, %v806
  %v870 = vadd.f32 %v869, %v807
  %v871 = vadd.f32 %v870, %v808
  %v872 = vadd.f32 %v871, %v809
  %v873 = vadd.f32 %v872, %v810
  %v874 = vadd.f32 %v873, %v811
  %v875 = vadd.f32 %v874, %v812
  %v876 = vadd.f32 %v875, %v813
  %v877 = vadd.f32 %v876, %v814
  %v878 = vadd.f32 %v877, %v815
  %v879 = vadd.f32 %v878, %v816
  %v880 = vadd.f32 %v879, %v817
  %v881 = vadd.f32 %v880, %v818
  %v882 = vadd.f32 %v881, %v819
  %v883 = vadd.f32 %v882, %v820
  %v884 = vadd.f32 %v883, %v821
  %v885 = vadd.f32 %v884, %v822
  %v886 = vadd.f32 %v885, %v823
  %v887 = vadd.f32 %v886, %v824
  %v888 = vadd.f32 %v887, %v825
  %v889 = vadd.f32 %v888, %v826
  %v890 = vadd.f32 %v889, %v827
  %v891 = vadd.f32 %v890, %v828
  %v892 = vadd.f32 %v891, %v829
  %v893 = vadd.f32 %v765, %v892
  %894 = vst [vmem:[%s4] sm:$0xff] %v893
  %s895 = sadd.s32 0, 0
  %s896 = smul.u32 64, %s895
  %p897 = scmp.lt.s32.totalorder %s896, 63
  %s898 = scalar_select %p897, %s896, 63
  %s899 = smul.addr %s898, 4
  %s900 = scalar_lea.vmem %s2, %s899
  // Predicated region
  $region14: #{residual_block_forward.4} parent=0 // pred_check
    _
  $region15: #{residual_block_forward.4} parent=0 // pred_check_branch
    %902 = sbr.rel (0) target = $region17
  $region16: #{residual_block_forward.4} parent=0 // pred_region
    %s903 = sadd.s32 0, 0
    %s904 = smul.u32 64, %s903
  $region17: #{residual_block_forward.4} parent=0 // pred_fallthru
    _
  // Predicated region
  $region18: #{residual_block_forward.4} parent=0 // pred_check
    _
  $region19: #{residual_block_forward.4} parent=0 // pred_check_branch
    %906 = sbr.rel (0) target = $region21
  $region20: #{residual_block_forward.4} parent=0 // pred_region
    _
  $region21: #{residual_block_forward.4} parent=0 // pred_fallthru
    _
  // Predicated region
  $region22: #{residual_block_forward.4} parent=0 // pred_check
    _
  $region23: #{residual_block_forward.4} parent=0 // pred_check_branch
    %908 = sbr.rel (0) target = $region25
  $region24: #{residual_block_forward.4} parent=0 // pred_region
    _
  $region25: #{residual_block_forward.4} parent=0 // pred_fallthru
    _
  // Predicated region
  $region26: #{residual_block_forward.4} parent=0 // pred_check
    _
  $region27: #{residual_block_forward.4} parent=0 // pred_check_branch
    %910 = sbr.rel (0) target = $region29
  $region28: #{residual_block_forward.4} parent=0 // pred_region
    %s911 = sadd.s32 0, 0
    %s912 = smul.u32 64, %s911
    %p913 = scmp.lt.s32.totalorder %s912, 63
    %s914 = scalar_select %p913, %s912, 63
    %s915 = smul.addr %s914, 4
    %s916 = scalar_lea.vmem %s2, %s915
  $region29: #{residual_block_forward.4} parent=0 // pred_fallthru
    _
  // Predicated region
  $region30: #{residual_block_forward.4} parent=0 // pred_check
    _
  $region31: #{residual_block_forward.4} parent=0 // pred_check_branch
    %918 = sbr.rel (0) target = $region33
  $region32: #{residual_block_forward.4} parent=0 // pred_region
    _
  $region33: #{residual_block_forward.4} parent=0 // pred_fallthru
    _
  // Predicated region
  $region34: #{residual_block_forward.4} parent=0 // pred_check
    _
  $region35: #{residual_block_forward.4} parent=0 // pred_check_branch
    %920 = sbr.rel (0) target = $region37
  $region36: #{residual_block_forward.4} parent=0 // pred_region
    _
  $region37: #{residual_block_forward.4} parent=0 // pred_fallthru
    _

// kernel: residual_block_forward.5
$region0: #{residual_block_forward.5}
  #allocation0 [shape = 'u32[]', space=smem, size = 0x4, offset = 0x4, fixed_abs, tag = 'smem constant byte address 0x4 - core index']
  #allocation1 [shape = 'u32[72,128]{1,0:T(1,128)}', space=vmem, size = 0x9000, scoped, tag = 'internal scratch']
  %s0 = inlined_call_operand.vmem [shape: bf16[512,128], index: 0, kind: input, shape index: {}]
  %s1 = inlined_call_operand.vmem [shape: f32[1,128], index: 1, kind: input, shape index: {}]
  %s2 = inlined_call_operand.vmem [shape: f32[1,128], index: 2, kind: input, shape index: {}]
  %s3 = inlined_call_operand.vmem [shape: bf16[512,4], index: 3, kind: output, shape index: {}]
  %s4 = sld [smem:[#allocation0]]
  $region22: #{residual_block_forward.5} parent=0
    _
  %s6 = ssub.s32 1, %s4
  %s7 = scalar_select 0, %s6, %s4
  // Predicated region
  $region2: #{residual_block_forward.5} parent=0 // pred_check
    _
  $region3: #{residual_block_forward.5} parent=0 // pred_check_branch
    %9 = sbr.rel (0) target = $region5
  $region4: #{residual_block_forward.5} parent=0 // pred_region
    _
  $region5: #{residual_block_forward.5} parent=0 // pred_fallthru
    _
  // Predicated region
  $region6: #{residual_block_forward.5} parent=0 // pred_check
    _
  $region7: #{residual_block_forward.5} parent=0 // pred_check_branch
    %11 = sbr.rel (0) target = $region9
  $region8: #{residual_block_forward.5} parent=0 // pred_region
    _
  $region9: #{residual_block_forward.5} parent=0 // pred_fallthru
    _
  // Predicated region
  $region10: #{residual_block_forward.5} parent=0 // pred_check
    _
  $region11: #{residual_block_forward.5} parent=0 // pred_check_branch
    %13 = sbr.rel (0) target = $region13
  $region12: #{residual_block_forward.5} parent=0 // pred_region
    _
  $region13: #{residual_block_forward.5} parent=0 // pred_fallthru
    _
  %v14 = vld [vmem:[%s0] sm:$0xf]
  %v15 = vld [vmem:[%s0 + $0x4] sm:$0xf]
  %v16 = vld [vmem:[%s0 + $0x8] sm:$0xf]
  %v17 = vld [vmem:[%s0 + $0xc] sm:$0xf]
  %v18 = vld [vmem:[%s0 + $0x10] sm:$0xf]
  %v19 = vld [vmem:[%s0 + $0x14] sm:$0xf]
  %v20 = vld [vmem:[%s0 + $0x18] sm:$0xf]
  %v21 = vld [vmem:[%s0 + $0x1c] sm:$0xf]
  %v22 = vld [vmem:[%s0 + $0x20] sm:$0xf]
  %v23 = vld [vmem:[%s0 + $0x24] sm:$0xf]
  %v24 = vld [vmem:[%s0 + $0x28] sm:$0xf]
  %v25 = vld [vmem:[%s0 + $0x2c] sm:$0xf]
  %v26 = vld [vmem:[%s0 + $0x30] sm:$0xf]
  %v27 = vld [vmem:[%s0 + $0x34] sm:$0xf]
  %v28 = vld [vmem:[%s0 + $0x38] sm:$0xf]
  %v29 = vld [vmem:[%s0 + $0x3c] sm:$0xf]
  %v30 = vld [vmem:[%s0 + $0x40] sm:$0xf]
  %v31 = vld [vmem:[%s0 + $0x44] sm:$0xf]
  %v32 = vld [vmem:[%s0 + $0x48] sm:$0xf]
  %v33 = vld [vmem:[%s0 + $0x4c] sm:$0xf]
  %v34 = vld [vmem:[%s0 + $0x50] sm:$0xf]
  %v35 = vld [vmem:[%s0 + $0x54] sm:$0xf]
  %v36 = vld [vmem:[%s0 + $0x58] sm:$0xf]
  %v37 = vld [vmem:[%s0 + $0x5c] sm:$0xf]
  %v38 = vld [vmem:[%s0 + $0x60] sm:$0xf]
  %v39 = vld [vmem:[%s0 + $0x64] sm:$0xf]
  %v40 = vld [vmem:[%s0 + $0x68] sm:$0xf]
  %v41 = vld [vmem:[%s0 + $0x6c] sm:$0xf]
  %v42 = vld [vmem:[%s0 + $0x70] sm:$0xf]
  %v43 = vld [vmem:[%s0 + $0x74] sm:$0xf]
  %v44 = vld [vmem:[%s0 + $0x78] sm:$0xf]
  %v45 = vld [vmem:[%s0 + $0x7c] sm:$0xf]
  %v46 = vld [vmem:[%s0 + $0x80] sm:$0xf]
  %v47 = vld [vmem:[%s0 + $0x84] sm:$0xf]
  %v48 = vld [vmem:[%s0 + $0x88] sm:$0xf]
  %v49 = vld [vmem:[%s0 + $0x8c] sm:$0xf]
  %v50 = vld [vmem:[%s0 + $0x90] sm:$0xf]
  %v51 = vld [vmem:[%s0 + $0x94] sm:$0xf]
  %v52 = vld [vmem:[%s0 + $0x98] sm:$0xf]
  %v53 = vld [vmem:[%s0 + $0x9c] sm:$0xf]
  %v54 = vld [vmem:[%s0 + $0xa0] sm:$0xf]
  %v55 = vld [vmem:[%s0 + $0xa4] sm:$0xf]
  %v56 = vld [vmem:[%s0 + $0xa8] sm:$0xf]
  %v57 = vld [vmem:[%s0 + $0xac] sm:$0xf]
  %v58 = vld [vmem:[%s0 + $0xb0] sm:$0xf]
  %v59 = vld [vmem:[%s0 + $0xb4] sm:$0xf]
  %v60 = vld [vmem:[%s0 + $0xb8] sm:$0xf]
  %v61 = vld [vmem:[%s0 + $0xbc] sm:$0xf]
  %v62 = vld [vmem:[%s0 + $0xc0] sm:$0xf]
  %v63 = vld [vmem:[%s0 + $0xc4] sm:$0xf]
  %v64 = vld [vmem:[%s0 + $0xc8] sm:$0xf]
  %v65 = vld [vmem:[%s0 + $0xcc] sm:$0xf]
  %v66 = vld [vmem:[%s0 + $0xd0] sm:$0xf]
  %v67 = vld [vmem:[%s0 + $0xd4] sm:$0xf]
  %v68 = vld [vmem:[%s0 + $0xd8] sm:$0xf]
  %v69 = vld [vmem:[%s0 + $0xdc] sm:$0xf]
  %v70 = vld [vmem:[%s0 + $0xe0] sm:$0xf]
  %v71 = vld [vmem:[%s0 + $0xe4] sm:$0xf]
  %v72 = vld [vmem:[%s0 + $0xe8] sm:$0xf]
  %v73 = vld [vmem:[%s0 + $0xec] sm:$0xf]
  %v74 = vld [vmem:[%s0 + $0xf0] sm:$0xf]
  %v75 = vld [vmem:[%s0 + $0xf4] sm:$0xf]
  %v76 = vld [vmem:[%s0 + $0xf8] sm:$0xf]
  %v77 = vld [vmem:[%s0 + $0xfc] sm:$0xf]
  %v78 = vunpack.c.l.bf16 %v14
  %v79 = vunpack.c.l.bf16 %v15
  %v80 = vunpack.c.l.bf16 %v16
  %v81 = vunpack.c.l.bf16 %v17
  %v82 = vunpack.c.l.bf16 %v18
  %v83 = vunpack.c.l.bf16 %v19
  %v84 = vunpack.c.l.bf16 %v20
  %v85 = vunpack.c.l.bf16 %v21
  %v86 = vunpack.c.l.bf16 %v22
  %v87 = vunpack.c.l.bf16 %v23
  %v88 = vunpack.c.l.bf16 %v24
  %v89 = vunpack.c.l.bf16 %v25
  %v90 = vunpack.c.l.bf16 %v26
  %v91 = vunpack.c.l.bf16 %v27
  %v92 = vunpack.c.l.bf16 %v28
  %v93 = vunpack.c.l.bf16 %v29
  %v94 = vunpack.c.l.bf16 %v30
  %v95 = vunpack.c.l.bf16 %v31
  %v96 = vunpack.c.l.bf16 %v32
  %v97 = vunpack.c.l.bf16 %v33
  %v98 = vunpack.c.l.bf16 %v34
  %v99 = vunpack.c.l.bf16 %v35
  %v100 = vunpack.c.l.bf16 %v36
  %v101 = vunpack.c.l.bf16 %v37
  %v102 = vunpack.c.l.bf16 %v38
  %v103 = vunpack.c.l.bf16 %v39
  %v104 = vunpack.c.l.bf16 %v40
  %v105 = vunpack.c.l.bf16 %v41
  %v106 = vunpack.c.l.bf16 %v42
  %v107 = vunpack.c.l.bf16 %v43
  %v108 = vunpack.c.l.bf16 %v44
  %v109 = vunpack.c.l.bf16 %v45
  %v110 = vunpack.c.l.bf16 %v46
  %v111 = vunpack.c.l.bf16 %v47
  %v112 = vunpack.c.l.bf16 %v48
  %v113 = vunpack.c.l.bf16 %v49
  %v114 = vunpack.c.l.bf16 %v50
  %v115 = vunpack.c.l.bf16 %v51
  %v116 = vunpack.c.l.bf16 %v52
  %v117 = vunpack.c.l.bf16 %v53
  %v118 = vunpack.c.l.bf16 %v54
  %v119 = vunpack.c.l.bf16 %v55
  %v120 = vunpack.c.l.bf16 %v56
  %v121 = vunpack.c.l.bf16 %v57
  %v122 = vunpack.c.l.bf16 %v58
  %v123 = vunpack.c.l.bf16 %v59
  %v124 = vunpack.c.l.bf16 %v60
  %v125 = vunpack.c.l.bf16 %v61
  %v126 = vunpack.c.l.bf16 %v62
  %v127 = vunpack.c.l.bf16 %v63
  %v128 = vunpack.c.l.bf16 %v64
  %v129 = vunpack.c.l.bf16 %v65
  %v130 = vunpack.c.l.bf16 %v66
  %v131 = vunpack.c.l.bf16 %v67
  %v132 = vunpack.c.l.bf16 %v68
  %v133 = vunpack.c.l.bf16 %v69
  %v134 = vunpack.c.l.bf16 %v70
  %v135 = vunpack.c.l.bf16 %v71
  %v136 = vunpack.c.l.bf16 %v72
  %v137 = vunpack.c.l.bf16 %v73
  %v138 = vunpack.c.l.bf16 %v74
  %v139 = vunpack.c.l.bf16 %v75
  %v140 = vunpack.c.l.bf16 %v76
  %v141 = vunpack.c.l.bf16 %v77
  %v142 = vld [vmem:[%s1] sm:$0x1]
  %v144 = vperm.slane %v142, 0
  %v146 = vmul.f32 %v78, %v144
  %v147 = vmul.f32 %v79, %v144
  %v148 = vmul.f32 %v80, %v144
  %v149 = vmul.f32 %v81, %v144
  %v150 = vmul.f32 %v82, %v144
  %v151 = vmul.f32 %v83, %v144
  %v152 = vmul.f32 %v84, %v144
  %v153 = vmul.f32 %v85, %v144
  %v154 = vmul.f32 %v86, %v144
  %v155 = vmul.f32 %v87, %v144
  %v156 = vmul.f32 %v88, %v144
  %v157 = vmul.f32 %v89, %v144
  %v158 = vmul.f32 %v90, %v144
  %v159 = vmul.f32 %v91, %v144
  %v160 = vmul.f32 %v92, %v144
  %v161 = vmul.f32 %v93, %v144
  %v162 = vmul.f32 %v94, %v144
  %v163 = vmul.f32 %v95, %v144
  %v164 = vmul.f32 %v96, %v144
  %v165 = vmul.f32 %v97, %v144
  %v166 = vmul.f32 %v98, %v144
  %v167 = vmul.f32 %v99, %v144
  %v168 = vmul.f32 %v100, %v144
  %v169 = vmul.f32 %v101, %v144
  %v170 = vmul.f32 %v102, %v144
  %v171 = vmul.f32 %v103, %v144
  %v172 = vmul.f32 %v104, %v144
  %v173 = vmul.f32 %v105, %v144
  %v174 = vmul.f32 %v106, %v144
  %v175 = vmul.f32 %v107, %v144
  %v176 = vmul.f32 %v108, %v144
  %v177 = vmul.f32 %v109, %v144
  %v178 = vmul.f32 %v110, %v144
  %v179 = vmul.f32 %v111, %v144
  %v180 = vmul.f32 %v112, %v144
  %v181 = vmul.f32 %v113, %v144
  %v182 = vmul.f32 %v114, %v144
  %v183 = vmul.f32 %v115, %v144
  %v184 = vmul.f32 %v116, %v144
  %v185 = vmul.f32 %v117, %v144
  %v186 = vmul.f32 %v118, %v144
  %v187 = vmul.f32 %v119, %v144
  %v188 = vmul.f32 %v120, %v144
  %v189 = vmul.f32 %v121, %v144
  %v190 = vmul.f32 %v122, %v144
  %v191 = vmul.f32 %v123, %v144
  %v192 = vmul.f32 %v124, %v144
  %v193 = vmul.f32 %v125, %v144
  %v194 = vmul.f32 %v126, %v144
  %v195 = vmul.f32 %v127, %v144
  %v196 = vmul.f32 %v128, %v144
  %v197 = vmul.f32 %v129, %v144
  %v198 = vmul.f32 %v130, %v144
  %v199 = vmul.f32 %v131, %v144
  %v200 = vmul.f32 %v132, %v144
  %v201 = vmul.f32 %v133, %v144
  %v202 = vmul.f32 %v134, %v144
  %v203 = vmul.f32 %v135, %v144
  %v204 = vmul.f32 %v136, %v144
  %v205 = vmul.f32 %v137, %v144
  %v206 = vmul.f32 %v138, %v144
  %v207 = vmul.f32 %v139, %v144
  %v208 = vmul.f32 %v140, %v144
  %v209 = vmul.f32 %v141, %v144
  %v210 = vld [vmem:[%s2] sm:$0x1]
  %v212 = vperm.slane %v210, 0
  %v214 = vadd.f32 %v146, %v212
  %v215 = vadd.f32 %v147, %v212
  %v216 = vadd.f32 %v148, %v212
  %v217 = vadd.f32 %v149, %v212
  %v218 = vadd.f32 %v150, %v212
  %v219 = vadd.f32 %v151, %v212
  %v220 = vadd.f32 %v152, %v212
  %v221 = vadd.f32 %v153, %v212
  %v222 = vadd.f32 %v154, %v212
  %v223 = vadd.f32 %v155, %v212
  %v224 = vadd.f32 %v156, %v212
  %v225 = vadd.f32 %v157, %v212
  %v226 = vadd.f32 %v158, %v212
  %v227 = vadd.f32 %v159, %v212
  %v228 = vadd.f32 %v160, %v212
  %v229 = vadd.f32 %v161, %v212
  %v230 = vadd.f32 %v162, %v212
  %v231 = vadd.f32 %v163, %v212
  %v232 = vadd.f32 %v164, %v212
  %v233 = vadd.f32 %v165, %v212
  %v234 = vadd.f32 %v166, %v212
  %v235 = vadd.f32 %v167, %v212
  %v236 = vadd.f32 %v168, %v212
  %v237 = vadd.f32 %v169, %v212
  %v238 = vadd.f32 %v170, %v212
  %v239 = vadd.f32 %v171, %v212
  %v240 = vadd.f32 %v172, %v212
  %v241 = vadd.f32 %v173, %v212
  %v242 = vadd.f32 %v174, %v212
  %v243 = vadd.f32 %v175, %v212
  %v244 = vadd.f32 %v176, %v212
  %v245 = vadd.f32 %v177, %v212
  %v246 = vadd.f32 %v178, %v212
  %v247 = vadd.f32 %v179, %v212
  %v248 = vadd.f32 %v180, %v212
  %v249 = vadd.f32 %v181, %v212
  %v250 = vadd.f32 %v182, %v212
  %v251 = vadd.f32 %v183, %v212
  %v252 = vadd.f32 %v184, %v212
  %v253 = vadd.f32 %v185, %v212
  %v254 = vadd.f32 %v186, %v212
  %v255 = vadd.f32 %v187, %v212
  %v256 = vadd.f32 %v188, %v212
  %v257 = vadd.f32 %v189, %v212
  %v258 = vadd.f32 %v190, %v212
  %v259 = vadd.f32 %v191, %v212
  %v260 = vadd.f32 %v192, %v212
  %v261 = vadd.f32 %v193, %v212
  %v262 = vadd.f32 %v194, %v212
  %v263 = vadd.f32 %v195, %v212
  %v264 = vadd.f32 %v196, %v212
  %v265 = vadd.f32 %v197, %v212
  %v266 = vadd.f32 %v198, %v212
  %v267 = vadd.f32 %v199, %v212
  %v268 = vadd.f32 %v200, %v212
  %v269 = vadd.f32 %v201, %v212
  %v270 = vadd.f32 %v202, %v212
  %v271 = vadd.f32 %v203, %v212
  %v272 = vadd.f32 %v204, %v212
  %v273 = vadd.f32 %v205, %v212
  %v274 = vadd.f32 %v206, %v212
  %v275 = vadd.f32 %v207, %v212
  %v276 = vadd.f32 %v208, %v212
  %v277 = vadd.f32 %v209, %v212
  %v278 = vmax.f32 %v214, 0.0
  %v279 = vmax.f32 %v215, 0.0
  %v280 = vmax.f32 %v216, 0.0
  %v281 = vmax.f32 %v217, 0.0
  %v282 = vmax.f32 %v218, 0.0
  %v283 = vmax.f32 %v219, 0.0
  %v284 = vmax.f32 %v220, 0.0
  %v285 = vmax.f32 %v221, 0.0
  %v286 = vmax.f32 %v222, 0.0
  %v287 = vmax.f32 %v223, 0.0
  %v288 = vmax.f32 %v224, 0.0
  %v289 = vmax.f32 %v225, 0.0
  %v290 = vmax.f32 %v226, 0.0
  %v291 = vmax.f32 %v227, 0.0
  %v292 = vmax.f32 %v228, 0.0
  %v293 = vmax.f32 %v229, 0.0
  %v294 = vmax.f32 %v230, 0.0
  %v295 = vmax.f32 %v231, 0.0
  %v296 = vmax.f32 %v232, 0.0
  %v297 = vmax.f32 %v233, 0.0
  %v298 = vmax.f32 %v234, 0.0
  %v299 = vmax.f32 %v235, 0.0
  %v300 = vmax.f32 %v236, 0.0
  %v301 = vmax.f32 %v237, 0.0
  %v302 = vmax.f32 %v238, 0.0
  %v303 = vmax.f32 %v239, 0.0
  %v304 = vmax.f32 %v240, 0.0
  %v305 = vmax.f32 %v241, 0.0
  %v306 = vmax.f32 %v242, 0.0
  %v307 = vmax.f32 %v243, 0.0
  %v308 = vmax.f32 %v244, 0.0
  %v309 = vmax.f32 %v245, 0.0
  %v310 = vmax.f32 %v246, 0.0
  %v311 = vmax.f32 %v247, 0.0
  %v312 = vmax.f32 %v248, 0.0
  %v313 = vmax.f32 %v249, 0.0
  %v314 = vmax.f32 %v250, 0.0
  %v315 = vmax.f32 %v251, 0.0
  %v316 = vmax.f32 %v252, 0.0
  %v317 = vmax.f32 %v253, 0.0
  %v318 = vmax.f32 %v254, 0.0
  %v319 = vmax.f32 %v255, 0.0
  %v320 = vmax.f32 %v256, 0.0
  %v321 = vmax.f32 %v257, 0.0
  %v322 = vmax.f32 %v258, 0.0
  %v323 = vmax.f32 %v259, 0.0
  %v324 = vmax.f32 %v260, 0.0
  %v325 = vmax.f32 %v261, 0.0
  %v326 = vmax.f32 %v262, 0.0
  %v327 = vmax.f32 %v263, 0.0
  %v328 = vmax.f32 %v264, 0.0
  %v329 = vmax.f32 %v265, 0.0
  %v330 = vmax.f32 %v266, 0.0
  %v331 = vmax.f32 %v267, 0.0
  %v332 = vmax.f32 %v268, 0.0
  %v333 = vmax.f32 %v269, 0.0
  %v334 = vmax.f32 %v270, 0.0
  %v335 = vmax.f32 %v271, 0.0
  %v336 = vmax.f32 %v272, 0.0
  %v337 = vmax.f32 %v273, 0.0
  %v338 = vmax.f32 %v274, 0.0
  %v339 = vmax.f32 %v275, 0.0
  %v340 = vmax.f32 %v276, 0.0
  %v341 = vmax.f32 %v277, 0.0
  %v342 = vpack.c.bf16 %v278, %v278
  %v343 = vpack.c.bf16 %v279, %v279
  %v344 = vpack.c.bf16 %v280, %v280
  %v345 = vpack.c.bf16 %v281, %v281
  %v346 = vpack.c.bf16 %v282, %v282
  %v347 = vpack.c.bf16 %v283, %v283
  %v348 = vpack.c.bf16 %v284, %v284
  %v349 = vpack.c.bf16 %v285, %v285
  %v350 = vpack.c.bf16 %v286, %v286
  %v351 = vpack.c.bf16 %v287, %v287
  %v352 = vpack.c.bf16 %v288, %v288
  %v353 = vpack.c.bf16 %v289, %v289
  %v354 = vpack.c.bf16 %v290, %v290
  %v355 = vpack.c.bf16 %v291, %v291
  %v356 = vpack.c.bf16 %v292, %v292
  %v357 = vpack.c.bf16 %v293, %v293
  %v358 = vpack.c.bf16 %v294, %v294
  %v359 = vpack.c.bf16 %v295, %v295
  %v360 = vpack.c.bf16 %v296, %v296
  %v361 = vpack.c.bf16 %v297, %v297
  %v362 = vpack.c.bf16 %v298, %v298
  %v363 = vpack.c.bf16 %v299, %v299
  %v364 = vpack.c.bf16 %v300, %v300
  %v365 = vpack.c.bf16 %v301, %v301
  %v366 = vpack.c.bf16 %v302, %v302
  %v367 = vpack.c.bf16 %v303, %v303
  %v368 = vpack.c.bf16 %v304, %v304
  %v369 = vpack.c.bf16 %v305, %v305
  %v370 = vpack.c.bf16 %v306, %v306
  %v371 = vpack.c.bf16 %v307, %v307
  %v372 = vpack.c.bf16 %v308, %v308
  %v373 = vpack.c.bf16 %v309, %v309
  %v374 = vpack.c.bf16 %v310, %v310
  %v375 = vpack.c.bf16 %v311, %v311
  %v376 = vpack.c.bf16 %v312, %v312
  %v377 = vpack.c.bf16 %v313, %v313
  %v378 = vpack.c.bf16 %v314, %v314
  %v379 = vpack.c.bf16 %v315, %v315
  %v380 = vpack.c.bf16 %v316, %v316
  %v381 = vpack.c.bf16 %v317, %v317
  %v382 = vpack.c.bf16 %v318, %v318
  %v383 = vpack.c.bf16 %v319, %v319
  %v384 = vpack.c.bf16 %v320, %v320
  %v385 = vpack.c.bf16 %v321, %v321
  %v386 = vpack.c.bf16 %v322, %v322
  %v387 = vpack.c.bf16 %v323, %v323
  %v388 = vpack.c.bf16 %v324, %v324
  %v389 = vpack.c.bf16 %v325, %v325
  %v390 = vpack.c.bf16 %v326, %v326
  %v391 = vpack.c.bf16 %v327, %v327
  %v392 = vpack.c.bf16 %v328, %v328
  %v393 = vpack.c.bf16 %v329, %v329
  %v394 = vpack.c.bf16 %v330, %v330
  %v395 = vpack.c.bf16 %v331, %v331
  %v396 = vpack.c.bf16 %v332, %v332
  %v397 = vpack.c.bf16 %v333, %v333
  %v398 = vpack.c.bf16 %v334, %v334
  %v399 = vpack.c.bf16 %v335, %v335
  %v400 = vpack.c.bf16 %v336, %v336
  %v401 = vpack.c.bf16 %v337, %v337
  %v402 = vpack.c.bf16 %v338, %v338
  %v403 = vpack.c.bf16 %v339, %v339
  %v404 = vpack.c.bf16 %v340, %v340
  %v405 = vpack.c.bf16 %v341, %v341
  %vm406 = vcmask 27648
  %407 = vst.msk [vmem:[%s3] sm:$0xf] %vm406, %v342
  %408 = vst.msk [vmem:[%s3 + $0x4] sm:$0xf] %vm406, %v343
  %409 = vst.msk [vmem:[%s3 + $0x8] sm:$0xf] %vm406, %v344
  %410 = vst.msk [vmem:[%s3 + $0xc] sm:$0xf] %vm406, %v345
  %411 = vst.msk [vmem:[%s3 + $0x10] sm:$0xf] %vm406, %v346
  %412 = vst.msk [vmem:[%s3 + $0x14] sm:$0xf] %vm406, %v347
  %413 = vst.msk [vmem:[%s3 + $0x18] sm:$0xf] %vm406, %v348
  %414 = vst.msk [vmem:[%s3 + $0x1c] sm:$0xf] %vm406, %v349
  %415 = vst.msk [vmem:[%s3 + $0x20] sm:$0xf] %vm406, %v350
  %416 = vst.msk [vmem:[%s3 + $0x24] sm:$0xf] %vm406, %v351
  %417 = vst.msk [vmem:[%s3 + $0x28] sm:$0xf] %vm406, %v352
  %418 = vst.msk [vmem:[%s3 + $0x2c] sm:$0xf] %vm406, %v353
  %419 = vst.msk [vmem:[%s3 + $0x30] sm:$0xf] %vm406, %v354
  %420 = vst.msk [vmem:[%s3 + $0x34] sm:$0xf] %vm406, %v355
  %421 = vst.msk [vmem:[%s3 + $0x38] sm:$0xf] %vm406, %v356
  %422 = vst.msk [vmem:[%s3 + $0x3c] sm:$0xf] %vm406, %v357
  %423 = vst.msk [vmem:[%s3 + $0x40] sm:$0xf] %vm406, %v358
  %424 = vst.msk [vmem:[%s3 + $0x44] sm:$0xf] %vm406, %v359
  %425 = vst.msk [vmem:[%s3 + $0x48] sm:$0xf] %vm406, %v360
  %426 = vst.msk [vmem:[%s3 + $0x4c] sm:$0xf] %vm406, %v361
  %427 = vst.msk [vmem:[%s3 + $0x50] sm:$0xf] %vm406, %v362
  %428 = vst.msk [vmem:[%s3 + $0x54] sm:$0xf] %vm406, %v363
  %429 = vst.msk [vmem:[%s3 + $0x58] sm:$0xf] %vm406, %v364
  %430 = vst.msk [vmem:[%s3 + $0x5c] sm:$0xf] %vm406, %v365
  %431 = vst.msk [vmem:[%s3 + $0x60] sm:$0xf] %vm406, %v366
  %432 = vst.msk [vmem:[%s3 + $0x64] sm:$0xf] %vm406, %v367
  %433 = vst.msk [vmem:[%s3 + $0x68] sm:$0xf] %vm406, %v368
  %434 = vst.msk [vmem:[%s3 + $0x6c] sm:$0xf] %vm406, %v369
  %435 = vst.msk [vmem:[%s3 + $0x70] sm:$0xf] %vm406, %v370
  %436 = vst.msk [vmem:[%s3 + $0x74] sm:$0xf] %vm406, %v371
  %437 = vst.msk [vmem:[%s3 + $0x78] sm:$0xf] %vm406, %v372
  %438 = vst.msk [vmem:[%s3 + $0x7c] sm:$0xf] %vm406, %v373
  %439 = vst.msk [vmem:[%s3 + $0x80] sm:$0xf] %vm406, %v374
  %440 = vst.msk [vmem:[%s3 + $0x84] sm:$0xf] %vm406, %v375
  %441 = vst.msk [vmem:[%s3 + $0x88] sm:$0xf] %vm406, %v376
  %442 = vst.msk [vmem:[%s3 + $0x8c] sm:$0xf] %vm406, %v377
  %443 = vst.msk [vmem:[%s3 + $0x90] sm:$0xf] %vm406, %v378
  %444 = vst.msk [vmem:[%s3 + $0x94] sm:$0xf] %vm406, %v379
  %445 = vst.msk [vmem:[%s3 + $0x98] sm:$0xf] %vm406, %v380
  %446 = vst.msk [vmem:[%s3 + $0x9c] sm:$0xf] %vm406, %v381
  %447 = vst.msk [vmem:[%s3 + $0xa0] sm:$0xf] %vm406, %v382
  %448 = vst.msk [vmem:[%s3 + $0xa4] sm:$0xf] %vm406, %v383
  %449 = vst.msk [vmem:[%s3 + $0xa8] sm:$0xf] %vm406, %v384
  %450 = vst.msk [vmem:[%s3 + $0xac] sm:$0xf] %vm406, %v385
  %451 = vst.msk [vmem:[%s3 + $0xb0] sm:$0xf] %vm406, %v386
  %452 = vst.msk [vmem:[%s3 + $0xb4] sm:$0xf] %vm406, %v387
  %453 = vst.msk [vmem:[%s3 + $0xb8] sm:$0xf] %vm406, %v388
  %454 = vst.msk [vmem:[%s3 + $0xbc] sm:$0xf] %vm406, %v389
  %455 = vst.msk [vmem:[%s3 + $0xc0] sm:$0xf] %vm406, %v390
  %456 = vst.msk [vmem:[%s3 + $0xc4] sm:$0xf] %vm406, %v391
  %457 = vst.msk [vmem:[%s3 + $0xc8] sm:$0xf] %vm406, %v392
  %458 = vst.msk [vmem:[%s3 + $0xcc] sm:$0xf] %vm406, %v393
  %459 = vst.msk [vmem:[%s3 + $0xd0] sm:$0xf] %vm406, %v394
  %460 = vst.msk [vmem:[%s3 + $0xd4] sm:$0xf] %vm406, %v395
  %461 = vst.msk [vmem:[%s3 + $0xd8] sm:$0xf] %vm406, %v396
  %462 = vst.msk [vmem:[%s3 + $0xdc] sm:$0xf] %vm406, %v397
  %463 = vst.msk [vmem:[%s3 + $0xe0] sm:$0xf] %vm406, %v398
  %464 = vst.msk [vmem:[%s3 + $0xe4] sm:$0xf] %vm406, %v399
  %465 = vst.msk [vmem:[%s3 + $0xe8] sm:$0xf] %vm406, %v400
  %466 = vst.msk [vmem:[%s3 + $0xec] sm:$0xf] %vm406, %v401
  %467 = vst.msk [vmem:[%s3 + $0xf0] sm:$0xf] %vm406, %v402
  %468 = vst.msk [vmem:[%s3 + $0xf4] sm:$0xf] %vm406, %v403
  %469 = vst.msk [vmem:[%s3 + $0xf8] sm:$0xf] %vm406, %v404
  %470 = vst.msk [vmem:[%s3 + $0xfc] sm:$0xf] %vm406, %v405
  // Predicated region
  $region14: #{residual_block_forward.5} parent=0 // pred_check
    _
  $region15: #{residual_block_forward.5} parent=0 // pred_check_branch
    %472 = sbr.rel (0) target = $region17
  $region16: #{residual_block_forward.5} parent=0 // pred_region
    _
  $region17: #{residual_block_forward.5} parent=0 // pred_fallthru
    _
  // Predicated region
  $region18: #{residual_block_forward.5} parent=0 // pred_check
    _
  $region19: #{residual_block_forward.5} parent=0 // pred_check_branch
    %474 = sbr.rel (0) target = $region21
  $region20: #{residual_block_forward.5} parent=0 // pred_region
    _
  $region21: #{residual_block_forward.5} parent=0 // pred_fallthru
    _

// kernel: residual_block_forward.7
$region0: #{residual_block_forward.7}
  #allocation0 [shape = 'u32[]', space=smem, size = 0x4, offset = 0x4, fixed_abs, tag = 'smem constant byte address 0x4 - core index']
  #allocation1 [shape = 'u32[72,128]{1,0:T(1,128)}', space=vmem, size = 0x9000, scoped, tag = 'internal scratch']
  %s0 = inlined_call_operand.vmem [shape: bf16[512,128], index: 0, kind: input, shape index: {}]
  %s1 = inlined_call_operand.vmem [shape: f32[1,128], index: 1, kind: input, shape index: {}]
  %s2 = inlined_call_operand.vmem [shape: f32[1,128], index: 2, kind: input, shape index: {}]
  %s3 = inlined_call_operand.vmem [shape: f32[512,4], index: 3, kind: input, shape index: {}]
  %s4 = inlined_call_operand.vmem [shape: f32[512,4], index: 4, kind: output, shape index: {}]
  %s5 = sld [smem:[#allocation0]]
  $region26: #{residual_block_forward.7} parent=0
    _
  %s7 = ssub.s32 1, %s5
  %s8 = scalar_select 0, %s7, %s5
  // Predicated region
  $region2: #{residual_block_forward.7} parent=0 // pred_check
    _
  $region3: #{residual_block_forward.7} parent=0 // pred_check_branch
    %10 = sbr.rel (0) target = $region5
  $region4: #{residual_block_forward.7} parent=0 // pred_region
    _
  $region5: #{residual_block_forward.7} parent=0 // pred_fallthru
    _
  // Predicated region
  $region6: #{residual_block_forward.7} parent=0 // pred_check
    _
  $region7: #{residual_block_forward.7} parent=0 // pred_check_branch
    %12 = sbr.rel (0) target = $region9
  $region8: #{residual_block_forward.7} parent=0 // pred_region
    _
  $region9: #{residual_block_forward.7} parent=0 // pred_fallthru
    _
  // Predicated region
  $region10: #{residual_block_forward.7} parent=0 // pred_check
    _
  $region11: #{residual_block_forward.7} parent=0 // pred_check_branch
    %14 = sbr.rel (0) target = $region13
  $region12: #{residual_block_forward.7} parent=0 // pred_region
    _
  $region13: #{residual_block_forward.7} parent=0 // pred_fallthru
    _
  // Predicated region
  $region14: #{residual_block_forward.7} parent=0 // pred_check
    _
  $region15: #{residual_block_forward.7} parent=0 // pred_check_branch
    %16 = sbr.rel (0) target = $region17
  $region16: #{residual_block_forward.7} parent=0 // pred_region
    _
  $region17: #{residual_block_forward.7} parent=0 // pred_fallthru
    _
  %v17 = vld [vmem:[%s0] sm:$0xf]
  %v18 = vld [vmem:[%s0 + $0x4] sm:$0xf]
  %v19 = vld [vmem:[%s0 + $0x8] sm:$0xf]
  %v20 = vld [vmem:[%s0 + $0xc] sm:$0xf]
  %v21 = vld [vmem:[%s0 + $0x10] sm:$0xf]
  %v22 = vld [vmem:[%s0 + $0x14] sm:$0xf]
  %v23 = vld [vmem:[%s0 + $0x18] sm:$0xf]
  %v24 = vld [vmem:[%s0 + $0x1c] sm:$0xf]
  %v25 = vld [vmem:[%s0 + $0x20] sm:$0xf]
  %v26 = vld [vmem:[%s0 + $0x24] sm:$0xf]
  %v27 = vld [vmem:[%s0 + $0x28] sm:$0xf]
  %v28 = vld [vmem:[%s0 + $0x2c] sm:$0xf]
  %v29 = vld [vmem:[%s0 + $0x30] sm:$0xf]
  %v30 = vld [vmem:[%s0 + $0x34] sm:$0xf]
  %v31 = vld [vmem:[%s0 + $0x38] sm:$0xf]
  %v32 = vld [vmem:[%s0 + $0x3c] sm:$0xf]
  %v33 = vld [vmem:[%s0 + $0x40] sm:$0xf]
  %v34 = vld [vmem:[%s0 + $0x44] sm:$0xf]
  %v35 = vld [vmem:[%s0 + $0x48] sm:$0xf]
  %v36 = vld [vmem:[%s0 + $0x4c] sm:$0xf]
  %v37 = vld [vmem:[%s0 + $0x50] sm:$0xf]
  %v38 = vld [vmem:[%s0 + $0x54] sm:$0xf]
  %v39 = vld [vmem:[%s0 + $0x58] sm:$0xf]
  %v40 = vld [vmem:[%s0 + $0x5c] sm:$0xf]
  %v41 = vld [vmem:[%s0 + $0x60] sm:$0xf]
  %v42 = vld [vmem:[%s0 + $0x64] sm:$0xf]
  %v43 = vld [vmem:[%s0 + $0x68] sm:$0xf]
  %v44 = vld [vmem:[%s0 + $0x6c] sm:$0xf]
  %v45 = vld [vmem:[%s0 + $0x70] sm:$0xf]
  %v46 = vld [vmem:[%s0 + $0x74] sm:$0xf]
  %v47 = vld [vmem:[%s0 + $0x78] sm:$0xf]
  %v48 = vld [vmem:[%s0 + $0x7c] sm:$0xf]
  %v49 = vld [vmem:[%s0 + $0x80] sm:$0xf]
  %v50 = vld [vmem:[%s0 + $0x84] sm:$0xf]
  %v51 = vld [vmem:[%s0 + $0x88] sm:$0xf]
  %v52 = vld [vmem:[%s0 + $0x8c] sm:$0xf]
  %v53 = vld [vmem:[%s0 + $0x90] sm:$0xf]
  %v54 = vld [vmem:[%s0 + $0x94] sm:$0xf]
  %v55 = vld [vmem:[%s0 + $0x98] sm:$0xf]
  %v56 = vld [vmem:[%s0 + $0x9c] sm:$0xf]
  %v57 = vld [vmem:[%s0 + $0xa0] sm:$0xf]
  %v58 = vld [vmem:[%s0 + $0xa4] sm:$0xf]
  %v59 = vld [vmem:[%s0 + $0xa8] sm:$0xf]
  %v60 = vld [vmem:[%s0 + $0xac] sm:$0xf]
  %v61 = vld [vmem:[%s0 + $0xb0] sm:$0xf]
  %v62 = vld [vmem:[%s0 + $0xb4] sm:$0xf]
  %v63 = vld [vmem:[%s0 + $0xb8] sm:$0xf]
  %v64 = vld [vmem:[%s0 + $0xbc] sm:$0xf]
  %v65 = vld [vmem:[%s0 + $0xc0] sm:$0xf]
  %v66 = vld [vmem:[%s0 + $0xc4] sm:$0xf]
  %v67 = vld [vmem:[%s0 + $0xc8] sm:$0xf]
  %v68 = vld [vmem:[%s0 + $0xcc] sm:$0xf]
  %v69 = vld [vmem:[%s0 + $0xd0] sm:$0xf]
  %v70 = vld [vmem:[%s0 + $0xd4] sm:$0xf]
  %v71 = vld [vmem:[%s0 + $0xd8] sm:$0xf]
  %v72 = vld [vmem:[%s0 + $0xdc] sm:$0xf]
  %v73 = vld [vmem:[%s0 + $0xe0] sm:$0xf]
  %v74 = vld [vmem:[%s0 + $0xe4] sm:$0xf]
  %v75 = vld [vmem:[%s0 + $0xe8] sm:$0xf]
  %v76 = vld [vmem:[%s0 + $0xec] sm:$0xf]
  %v77 = vld [vmem:[%s0 + $0xf0] sm:$0xf]
  %v78 = vld [vmem:[%s0 + $0xf4] sm:$0xf]
  %v79 = vld [vmem:[%s0 + $0xf8] sm:$0xf]
  %v80 = vld [vmem:[%s0 + $0xfc] sm:$0xf]
  %v81 = vunpack.c.l.bf16 %v17
  %v82 = vunpack.c.l.bf16 %v18
  %v83 = vunpack.c.l.bf16 %v19
  %v84 = vunpack.c.l.bf16 %v20
  %v85 = vunpack.c.l.bf16 %v21
  %v86 = vunpack.c.l.bf16 %v22
  %v87 = vunpack.c.l.bf16 %v23
  %v88 = vunpack.c.l.bf16 %v24
  %v89 = vunpack.c.l.bf16 %v25
  %v90 = vunpack.c.l.bf16 %v26
  %v91 = vunpack.c.l.bf16 %v27
  %v92 = vunpack.c.l.bf16 %v28
  %v93 = vunpack.c.l.bf16 %v29
  %v94 = vunpack.c.l.bf16 %v30
  %v95 = vunpack.c.l.bf16 %v31
  %v96 = vunpack.c.l.bf16 %v32
  %v97 = vunpack.c.l.bf16 %v33
  %v98 = vunpack.c.l.bf16 %v34
  %v99 = vunpack.c.l.bf16 %v35
  %v100 = vunpack.c.l.bf16 %v36
  %v101 = vunpack.c.l.bf16 %v37
  %v102 = vunpack.c.l.bf16 %v38
  %v103 = vunpack.c.l.bf16 %v39
  %v104 = vunpack.c.l.bf16 %v40
  %v105 = vunpack.c.l.bf16 %v41
  %v106 = vunpack.c.l.bf16 %v42
  %v107 = vunpack.c.l.bf16 %v43
  %v108 = vunpack.c.l.bf16 %v44
  %v109 = vunpack.c.l.bf16 %v45
  %v110 = vunpack.c.l.bf16 %v46
  %v111 = vunpack.c.l.bf16 %v47
  %v112 = vunpack.c.l.bf16 %v48
  %v113 = vunpack.c.l.bf16 %v49
  %v114 = vunpack.c.l.bf16 %v50
  %v115 = vunpack.c.l.bf16 %v51
  %v116 = vunpack.c.l.bf16 %v52
  %v117 = vunpack.c.l.bf16 %v53
  %v118 = vunpack.c.l.bf16 %v54
  %v119 = vunpack.c.l.bf16 %v55
  %v120 = vunpack.c.l.bf16 %v56
  %v121 = vunpack.c.l.bf16 %v57
  %v122 = vunpack.c.l.bf16 %v58
  %v123 = vunpack.c.l.bf16 %v59
  %v124 = vunpack.c.l.bf16 %v60
  %v125 = vunpack.c.l.bf16 %v61
  %v126 = vunpack.c.l.bf16 %v62
  %v127 = vunpack.c.l.bf16 %v63
  %v128 = vunpack.c.l.bf16 %v64
  %v129 = vunpack.c.l.bf16 %v65
  %v130 = vunpack.c.l.bf16 %v66
  %v131 = vunpack.c.l.bf16 %v67
  %v132 = vunpack.c.l.bf16 %v68
  %v133 = vunpack.c.l.bf16 %v69
  %v134 = vunpack.c.l.bf16 %v70
  %v135 = vunpack.c.l.bf16 %v71
  %v136 = vunpack.c.l.bf16 %v72
  %v137 = vunpack.c.l.bf16 %v73
  %v138 = vunpack.c.l.bf16 %v74
  %v139 = vunpack.c.l.bf16 %v75
  %v140 = vunpack.c.l.bf16 %v76
  %v141 = vunpack.c.l.bf16 %v77
  %v142 = vunpack.c.l.bf16 %v78
  %v143 = vunpack.c.l.bf16 %v79
  %v144 = vunpack.c.l.bf16 %v80
  %v145 = vld [vmem:[%s1] sm:$0x1]
  %v147 = vperm.slane %v145, 0
  %v149 = vmul.f32 %v81, %v147
  %v150 = vmul.f32 %v82, %v147
  %v151 = vmul.f32 %v83, %v147
  %v152 = vmul.f32 %v84, %v147
  %v153 = vmul.f32 %v85, %v147
  %v154 = vmul.f32 %v86, %v147
  %v155 = vmul.f32 %v87, %v147
  %v156 = vmul.f32 %v88, %v147
  %v157 = vmul.f32 %v89, %v147
  %v158 = vmul.f32 %v90, %v147
  %v159 = vmul.f32 %v91, %v147
  %v160 = vmul.f32 %v92, %v147
  %v161 = vmul.f32 %v93, %v147
  %v162 = vmul.f32 %v94, %v147
  %v163 = vmul.f32 %v95, %v147
  %v164 = vmul.f32 %v96, %v147
  %v165 = vmul.f32 %v97, %v147
  %v166 = vmul.f32 %v98, %v147
  %v167 = vmul.f32 %v99, %v147
  %v168 = vmul.f32 %v100, %v147
  %v169 = vmul.f32 %v101, %v147
  %v170 = vmul.f32 %v102, %v147
  %v171 = vmul.f32 %v103, %v147
  %v172 = vmul.f32 %v104, %v147
  %v173 = vmul.f32 %v105, %v147
  %v174 = vmul.f32 %v106, %v147
  %v175 = vmul.f32 %v107, %v147
  %v176 = vmul.f32 %v108, %v147
  %v177 = vmul.f32 %v109, %v147
  %v178 = vmul.f32 %v110, %v147
  %v179 = vmul.f32 %v111, %v147
  %v180 = vmul.f32 %v112, %v147
  %v181 = vmul.f32 %v113, %v147
  %v182 = vmul.f32 %v114, %v147
  %v183 = vmul.f32 %v115, %v147
  %v184 = vmul.f32 %v116, %v147
  %v185 = vmul.f32 %v117, %v147
  %v186 = vmul.f32 %v118, %v147
  %v187 = vmul.f32 %v119, %v147
  %v188 = vmul.f32 %v120, %v147
  %v189 = vmul.f32 %v121, %v147
  %v190 = vmul.f32 %v122, %v147
  %v191 = vmul.f32 %v123, %v147
  %v192 = vmul.f32 %v124, %v147
  %v193 = vmul.f32 %v125, %v147
  %v194 = vmul.f32 %v126, %v147
  %v195 = vmul.f32 %v127, %v147
  %v196 = vmul.f32 %v128, %v147
  %v197 = vmul.f32 %v129, %v147
  %v198 = vmul.f32 %v130, %v147
  %v199 = vmul.f32 %v131, %v147
  %v200 = vmul.f32 %v132, %v147
  %v201 = vmul.f32 %v133, %v147
  %v202 = vmul.f32 %v134, %v147
  %v203 = vmul.f32 %v135, %v147
  %v204 = vmul.f32 %v136, %v147
  %v205 = vmul.f32 %v137, %v147
  %v206 = vmul.f32 %v138, %v147
  %v207 = vmul.f32 %v139, %v147
  %v208 = vmul.f32 %v140, %v147
  %v209 = vmul.f32 %v141, %v147
  %v210 = vmul.f32 %v142, %v147
  %v211 = vmul.f32 %v143, %v147
  %v212 = vmul.f32 %v144, %v147
  %v213 = vld [vmem:[%s2] sm:$0x1]
  %v215 = vperm.slane %v213, 0
  %v217 = vadd.f32 %v149, %v215
  %v218 = vadd.f32 %v150, %v215
  %v219 = vadd.f32 %v151, %v215
  %v220 = vadd.f32 %v152, %v215
  %v221 = vadd.f32 %v153, %v215
  %v222 = vadd.f32 %v154, %v215
  %v223 = vadd.f32 %v155, %v215
  %v224 = vadd.f32 %v156, %v215
  %v225 = vadd.f32 %v157, %v215
  %v226 = vadd.f32 %v158, %v215
  %v227 = vadd.f32 %v159, %v215
  %v228 = vadd.f32 %v160, %v215
  %v229 = vadd.f32 %v161, %v215
  %v230 = vadd.f32 %v162, %v215
  %v231 = vadd.f32 %v163, %v215
  %v232 = vadd.f32 %v164, %v215
  %v233 = vadd.f32 %v165, %v215
  %v234 = vadd.f32 %v166, %v215
  %v235 = vadd.f32 %v167, %v215
  %v236 = vadd.f32 %v168, %v215
  %v237 = vadd.f32 %v169, %v215
  %v238 = vadd.f32 %v170, %v215
  %v239 = vadd.f32 %v171, %v215
  %v240 = vadd.f32 %v172, %v215
  %v241 = vadd.f32 %v173, %v215
  %v242 = vadd.f32 %v174, %v215
  %v243 = vadd.f32 %v175, %v215
  %v244 = vadd.f32 %v176, %v215
  %v245 = vadd.f32 %v177, %v215
  %v246 = vadd.f32 %v178, %v215
  %v247 = vadd.f32 %v179, %v215
  %v248 = vadd.f32 %v180, %v215
  %v249 = vadd.f32 %v181, %v215
  %v250 = vadd.f32 %v182, %v215
  %v251 = vadd.f32 %v183, %v215
  %v252 = vadd.f32 %v184, %v215
  %v253 = vadd.f32 %v185, %v215
  %v254 = vadd.f32 %v186, %v215
  %v255 = vadd.f32 %v187, %v215
  %v256 = vadd.f32 %v188, %v215
  %v257 = vadd.f32 %v189, %v215
  %v258 = vadd.f32 %v190, %v215
  %v259 = vadd.f32 %v191, %v215
  %v260 = vadd.f32 %v192, %v215
  %v261 = vadd.f32 %v193, %v215
  %v262 = vadd.f32 %v194, %v215
  %v263 = vadd.f32 %v195, %v215
  %v264 = vadd.f32 %v196, %v215
  %v265 = vadd.f32 %v197, %v215
  %v266 = vadd.f32 %v198, %v215
  %v267 = vadd.f32 %v199, %v215
  %v268 = vadd.f32 %v200, %v215
  %v269 = vadd.f32 %v201, %v215
  %v270 = vadd.f32 %v202, %v215
  %v271 = vadd.f32 %v203, %v215
  %v272 = vadd.f32 %v204, %v215
  %v273 = vadd.f32 %v205, %v215
  %v274 = vadd.f32 %v206, %v215
  %v275 = vadd.f32 %v207, %v215
  %v276 = vadd.f32 %v208, %v215
  %v277 = vadd.f32 %v209, %v215
  %v278 = vadd.f32 %v210, %v215
  %v279 = vadd.f32 %v211, %v215
  %v280 = vadd.f32 %v212, %v215
  %v281 = vld [vmem:[%s3] sm:$0xff]
  %v282 = vld [vmem:[%s3 + $0x8] sm:$0xff]
  %v283 = vld [vmem:[%s3 + $0x10] sm:$0xff]
  %v284 = vld [vmem:[%s3 + $0x18] sm:$0xff]
  %v285 = vld [vmem:[%s3 + $0x20] sm:$0xff]
  %v286 = vld [vmem:[%s3 + $0x28] sm:$0xff]
  %v287 = vld [vmem:[%s3 + $0x30] sm:$0xff]
  %v288 = vld [vmem:[%s3 + $0x38] sm:$0xff]
  %v289 = vld [vmem:[%s3 + $0x40] sm:$0xff]
  %v290 = vld [vmem:[%s3 + $0x48] sm:$0xff]
  %v291 = vld [vmem:[%s3 + $0x50] sm:$0xff]
  %v292 = vld [vmem:[%s3 + $0x58] sm:$0xff]
  %v293 = vld [vmem:[%s3 + $0x60] sm:$0xff]
  %v294 = vld [vmem:[%s3 + $0x68] sm:$0xff]
  %v295 = vld [vmem:[%s3 + $0x70] sm:$0xff]
  %v296 = vld [vmem:[%s3 + $0x78] sm:$0xff]
  %v297 = vld [vmem:[%s3 + $0x80] sm:$0xff]
  %v298 = vld [vmem:[%s3 + $0x88] sm:$0xff]
  %v299 = vld [vmem:[%s3 + $0x90] sm:$0xff]
  %v300 = vld [vmem:[%s3 + $0x98] sm:$0xff]
  %v301 = vld [vmem:[%s3 + $0xa0] sm:$0xff]
  %v302 = vld [vmem:[%s3 + $0xa8] sm:$0xff]
  %v303 = vld [vmem:[%s3 + $0xb0] sm:$0xff]
  %v304 = vld [vmem:[%s3 + $0xb8] sm:$0xff]
  %v305 = vld [vmem:[%s3 + $0xc0] sm:$0xff]
  %v306 = vld [vmem:[%s3 + $0xc8] sm:$0xff]
  %v307 = vld [vmem:[%s3 + $0xd0] sm:$0xff]
  %v308 = vld [vmem:[%s3 + $0xd8] sm:$0xff]
  %v309 = vld [vmem:[%s3 + $0xe0] sm:$0xff]
  %v310 = vld [vmem:[%s3 + $0xe8] sm:$0xff]
  %v311 = vld [vmem:[%s3 + $0xf0] sm:$0xff]
  %v312 = vld [vmem:[%s3 + $0xf8] sm:$0xff]
  %v313 = vld [vmem:[%s3 + $0x100] sm:$0xff]
  %v314 = vld [vmem:[%s3 + $0x108] sm:$0xff]
  %v315 = vld [vmem:[%s3 + $0x110] sm:$0xff]
  %v316 = vld [vmem:[%s3 + $0x118] sm:$0xff]
  %v317 = vld [vmem:[%s3 + $0x120] sm:$0xff]
  %v318 = vld [vmem:[%s3 + $0x128] sm:$0xff]
  %v319 = vld [vmem:[%s3 + $0x130] sm:$0xff]
  %v320 = vld [vmem:[%s3 + $0x138] sm:$0xff]
  %v321 = vld [vmem:[%s3 + $0x140] sm:$0xff]
  %v322 = vld [vmem:[%s3 + $0x148] sm:$0xff]
  %v323 = vld [vmem:[%s3 + $0x150] sm:$0xff]
  %v324 = vld [vmem:[%s3 + $0x158] sm:$0xff]
  %v325 = vld [vmem:[%s3 + $0x160] sm:$0xff]
  %v326 = vld [vmem:[%s3 + $0x168] sm:$0xff]
  %v327 = vld [vmem:[%s3 + $0x170] sm:$0xff]
  %v328 = vld [vmem:[%s3 + $0x178] sm:$0xff]
  %v329 = vld [vmem:[%s3 + $0x180] sm:$0xff]
  %v330 = vld [vmem:[%s3 + $0x188] sm:$0xff]
  %v331 = vld [vmem:[%s3 + $0x190] sm:$0xff]
  %v332 = vld [vmem:[%s3 + $0x198] sm:$0xff]
  %v333 = vld [vmem:[%s3 + $0x1a0] sm:$0xff]
  %v334 = vld [vmem:[%s3 + $0x1a8] sm:$0xff]
  %v335 = vld [vmem:[%s3 + $0x1b0] sm:$0xff]
  %v336 = vld [vmem:[%s3 + $0x1b8] sm:$0xff]
  %v337 = vld [vmem:[%s3 + $0x1c0] sm:$0xff]
  %v338 = vld [vmem:[%s3 + $0x1c8] sm:$0xff]
  %v339 = vld [vmem:[%s3 + $0x1d0] sm:$0xff]
  %v340 = vld [vmem:[%s3 + $0x1d8] sm:$0xff]
  %v341 = vld [vmem:[%s3 + $0x1e0] sm:$0xff]
  %v342 = vld [vmem:[%s3 + $0x1e8] sm:$0xff]
  %v343 = vld [vmem:[%s3 + $0x1f0] sm:$0xff]
  %v344 = vld [vmem:[%s3 + $0x1f8] sm:$0xff]
  %v345 = vadd.f32 %v217, %v281
  %v346 = vadd.f32 %v218, %v282
  %v347 = vadd.f32 %v219, %v283
  %v348 = vadd.f32 %v220, %v284
  %v349 = vadd.f32 %v221, %v285
  %v350 = vadd.f32 %v222, %v286
  %v351 = vadd.f32 %v223, %v287
  %v352 = vadd.f32 %v224, %v288
  %v353 = vadd.f32 %v225, %v289
  %v354 = vadd.f32 %v226, %v290
  %v355 = vadd.f32 %v227, %v291
  %v356 = vadd.f32 %v228, %v292
  %v357 = vadd.f32 %v229, %v293
  %v358 = vadd.f32 %v230, %v294
  %v359 = vadd.f32 %v231, %v295
  %v360 = vadd.f32 %v232, %v296
  %v361 = vadd.f32 %v233, %v297
  %v362 = vadd.f32 %v234, %v298
  %v363 = vadd.f32 %v235, %v299
  %v364 = vadd.f32 %v236, %v300
  %v365 = vadd.f32 %v237, %v301
  %v366 = vadd.f32 %v238, %v302
  %v367 = vadd.f32 %v239, %v303
  %v368 = vadd.f32 %v240, %v304
  %v369 = vadd.f32 %v241, %v305
  %v370 = vadd.f32 %v242, %v306
  %v371 = vadd.f32 %v243, %v307
  %v372 = vadd.f32 %v244, %v308
  %v373 = vadd.f32 %v245, %v309
  %v374 = vadd.f32 %v246, %v310
  %v375 = vadd.f32 %v247, %v311
  %v376 = vadd.f32 %v248, %v312
  %v377 = vadd.f32 %v249, %v313
  %v378 = vadd.f32 %v250, %v314
  %v379 = vadd.f32 %v251, %v315
  %v380 = vadd.f32 %v252, %v316
  %v381 = vadd.f32 %v253, %v317
  %v382 = vadd.f32 %v254, %v318
  %v383 = vadd.f32 %v255, %v319
  %v384 = vadd.f32 %v256, %v320
  %v385 = vadd.f32 %v257, %v321
  %v386 = vadd.f32 %v258, %v322
  %v387 = vadd.f32 %v259, %v323
  %v388 = vadd.f32 %v260, %v324
  %v389 = vadd.f32 %v261, %v325
  %v390 = vadd.f32 %v262, %v326
  %v391 = vadd.f32 %v263, %v327
  %v392 = vadd.f32 %v264, %v328
  %v393 = vadd.f32 %v265, %v329
  %v394 = vadd.f32 %v266, %v330
  %v395 = vadd.f32 %v267, %v331
  %v396 = vadd.f32 %v268, %v332
  %v397 = vadd.f32 %v269, %v333
  %v398 = vadd.f32 %v270, %v334
  %v399 = vadd.f32 %v271, %v335
  %v400 = vadd.f32 %v272, %v336
  %v401 = vadd.f32 %v273, %v337
  %v402 = vadd.f32 %v274, %v338
  %v403 = vadd.f32 %v275, %v339
  %v404 = vadd.f32 %v276, %v340
  %v405 = vadd.f32 %v277, %v341
  %v406 = vadd.f32 %v278, %v342
  %v407 = vadd.f32 %v279, %v343
  %v408 = vadd.f32 %v280, %v344
  %vm409 = vcmask 31744
  %410 = vst.msk [vmem:[%s4] sm:$0xff] %vm409, %v345
  %411 = vst.msk [vmem:[%s4 + $0x8] sm:$0xff] %vm409, %v346
  %412 = vst.msk [vmem:[%s4 + $0x10] sm:$0xff] %vm409, %v347
  %413 = vst.msk [vmem:[%s4 + $0x18] sm:$0xff] %vm409, %v348
  %414 = vst.msk [vmem:[%s4 + $0x20] sm:$0xff] %vm409, %v349
  %415 = vst.msk [vmem:[%s4 + $0x28] sm:$0xff] %vm409, %v350
  %416 = vst.msk [vmem:[%s4 + $0x30] sm:$0xff] %vm409, %v351
  %417 = vst.msk [vmem:[%s4 + $0x38] sm:$0xff] %vm409, %v352
  %418 = vst.msk [vmem:[%s4 + $0x40] sm:$0xff] %vm409, %v353
  %419 = vst.msk [vmem:[%s4 + $0x48] sm:$0xff] %vm409, %v354
  %420 = vst.msk [vmem:[%s4 + $0x50] sm:$0xff] %vm409, %v355
  %421 = vst.msk [vmem:[%s4 + $0x58] sm:$0xff] %vm409, %v356
  %422 = vst.msk [vmem:[%s4 + $0x60] sm:$0xff] %vm409, %v357
  %423 = vst.msk [vmem:[%s4 + $0x68] sm:$0xff] %vm409, %v358
  %424 = vst.msk [vmem:[%s4 + $0x70] sm:$0xff] %vm409, %v359
  %425 = vst.msk [vmem:[%s4 + $0x78] sm:$0xff] %vm409, %v360
  %426 = vst.msk [vmem:[%s4 + $0x80] sm:$0xff] %vm409, %v361
  %427 = vst.msk [vmem:[%s4 + $0x88] sm:$0xff] %vm409, %v362
  %428 = vst.msk [vmem:[%s4 + $0x90] sm:$0xff] %vm409, %v363
  %429 = vst.msk [vmem:[%s4 + $0x98] sm:$0xff] %vm409, %v364
  %430 = vst.msk [vmem:[%s4 + $0xa0] sm:$0xff] %vm409, %v365
  %431 = vst.msk [vmem:[%s4 + $0xa8] sm:$0xff] %vm409, %v366
  %432 = vst.msk [vmem:[%s4 + $0xb0] sm:$0xff] %vm409, %v367
  %433 = vst.msk [vmem:[%s4 + $0xb8] sm:$0xff] %vm409, %v368
  %434 = vst.msk [vmem:[%s4 + $0xc0] sm:$0xff] %vm409, %v369
  %435 = vst.msk [vmem:[%s4 + $0xc8] sm:$0xff] %vm409, %v370
  %436 = vst.msk [vmem:[%s4 + $0xd0] sm:$0xff] %vm409, %v371
  %437 = vst.msk [vmem:[%s4 + $0xd8] sm:$0xff] %vm409, %v372
  %438 = vst.msk [vmem:[%s4 + $0xe0] sm:$0xff] %vm409, %v373
  %439 = vst.msk [vmem:[%s4 + $0xe8] sm:$0xff] %vm409, %v374
  %440 = vst.msk [vmem:[%s4 + $0xf0] sm:$0xff] %vm409, %v375
  %441 = vst.msk [vmem:[%s4 + $0xf8] sm:$0xff] %vm409, %v376
  %442 = vst.msk [vmem:[%s4 + $0x100] sm:$0xff] %vm409, %v377
  %443 = vst.msk [vmem:[%s4 + $0x108] sm:$0xff] %vm409, %v378
  %444 = vst.msk [vmem:[%s4 + $0x110] sm:$0xff] %vm409, %v379
  %445 = vst.msk [vmem:[%s4 + $0x118] sm:$0xff] %vm409, %v380
  %446 = vst.msk [vmem:[%s4 + $0x120] sm:$0xff] %vm409, %v381
  %447 = vst.msk [vmem:[%s4 + $0x128] sm:$0xff] %vm409, %v382
  %448 = vst.msk [vmem:[%s4 + $0x130] sm:$0xff] %vm409, %v383
  %449 = vst.msk [vmem:[%s4 + $0x138] sm:$0xff] %vm409, %v384
  %450 = vst.msk [vmem:[%s4 + $0x140] sm:$0xff] %vm409, %v385
  %451 = vst.msk [vmem:[%s4 + $0x148] sm:$0xff] %vm409, %v386
  %452 = vst.msk [vmem:[%s4 + $0x150] sm:$0xff] %vm409, %v387
  %453 = vst.msk [vmem:[%s4 + $0x158] sm:$0xff] %vm409, %v388
  %454 = vst.msk [vmem:[%s4 + $0x160] sm:$0xff] %vm409, %v389
  %455 = vst.msk [vmem:[%s4 + $0x168] sm:$0xff] %vm409, %v390
  %456 = vst.msk [vmem:[%s4 + $0x170] sm:$0xff] %vm409, %v391
  %457 = vst.msk [vmem:[%s4 + $0x178] sm:$0xff] %vm409, %v392
  %458 = vst.msk [vmem:[%s4 + $0x180] sm:$0xff] %vm409, %v393
  %459 = vst.msk [vmem:[%s4 + $0x188] sm:$0xff] %vm409, %v394
  %460 = vst.msk [vmem:[%s4 + $0x190] sm:$0xff] %vm409, %v395
  %461 = vst.msk [vmem:[%s4 + $0x198] sm:$0xff] %vm409, %v396
  %462 = vst.msk [vmem:[%s4 + $0x1a0] sm:$0xff] %vm409, %v397
  %463 = vst.msk [vmem:[%s4 + $0x1a8] sm:$0xff] %vm409, %v398
  %464 = vst.msk [vmem:[%s4 + $0x1b0] sm:$0xff] %vm409, %v399
  %465 = vst.msk [vmem:[%s4 + $0x1b8] sm:$0xff] %vm409, %v400
  %466 = vst.msk [vmem:[%s4 + $0x1c0] sm:$0xff] %vm409, %v401
  %467 = vst.msk [vmem:[%s4 + $0x1c8] sm:$0xff] %vm409, %v402
  %468 = vst.msk [vmem:[%s4 + $0x1d0] sm:$0xff] %vm409, %v403
  %469 = vst.msk [vmem:[%s4 + $0x1d8] sm:$0xff] %vm409, %v404
  %470 = vst.msk [vmem:[%s4 + $0x1e0] sm:$0xff] %vm409, %v405
  %471 = vst.msk [vmem:[%s4 + $0x1e8] sm:$0xff] %vm409, %v406
  %472 = vst.msk [vmem:[%s4 + $0x1f0] sm:$0xff] %vm409, %v407
  %473 = vst.msk [vmem:[%s4 + $0x1f8] sm:$0xff] %vm409, %v408
  // Predicated region
  $region18: #{residual_block_forward.7} parent=0 // pred_check
    _
  $region19: #{residual_block_forward.7} parent=0 // pred_check_branch
    %475 = sbr.rel (0) target = $region21
  $region20: #{residual_block_forward.7} parent=0 // pred_region
    _
  $region21: #{residual_block_forward.7} parent=0 // pred_fallthru
    _
  // Predicated region
  $region22: #{residual_block_forward.7} parent=0 // pred_check
    _
  $region23: #{residual_block_forward.7} parent=0 // pred_check_branch
    %477 = sbr.rel (0) target = $region25
  $region24: #{residual_block_forward.7} parent=0 // pred_region
    _
  $region25: #{residual_block_forward.7} parent=0 // pred_fallthru
    _

</llo_original>
